<compile_context>
chip_gen: v7x
topology: tpu7x:2x2x1
jax: 0.10.0
libtpu: 0.0.40
codegen_flags: <defaults>
</compile_context>

<pallas_src>
import functools

import jax
import jax.numpy as jnp
from jax import lax
from jax.experimental import pallas as pl
from jax.experimental.pallas import tpu as pltpu


def _round_up(n, m):
    return ((n + m - 1) // m) * m


# ---------------------------------------------------------------------------
# Fused Pallas kernel: full Discriminator forward for one batch element.
# ---------------------------------------------------------------------------
def _fused_disc_kernel(*refs, configs):
    """refs = (x_ref, w0, b0, ..., wN, bN, out_ref, scr0, ..., scrN).

    configs[i] = (ktaps, stride, padding, lout, apply_silu)   (all static).
    scr[i] holds layer i's zero-padded input activation, shape
    (Lin_i + 2*pad_i, Cin_pad_i) in f32, sequence on sublanes / channels on
    lanes.  Weights are pre-flattened (K*Cin_pad, Cout_pad) bf16; biases are
    (1, Cout_pad) f32.
    """
    n_layers = len(configs)
    x_ref = refs[0]
    params = refs[1:1 + 2 * n_layers]
    o_ref = refs[1 + 2 * n_layers]
    scratch = refs[2 + 2 * n_layers:]

    # Stage the (L, Cin_pad) input into the padded layer-0 scratch buffer.
    pad0 = configs[0][2]
    s0 = scratch[0]
    if pad0 > 0:
        s0[...] = jnp.zeros_like(s0)              # zero the conv halo rows
    s0[pl.ds(pad0, x_ref.shape[0]), :] = x_ref[...]

    for i, (ktaps, stride, padding, lout, apply_silu) in enumerate(configs):
        in_scr = scratch[i]
        w_ref = params[2 * i]                     # (K*Cin_pad, Cout_pad) bf16
        b_ref = params[2 * i + 1]                 # (1, Cout_pad) f32

        # In-VMEM im2col: K cheap (strided) sublane slices of the padded
        # activation, concatenated along lanes -> (lout, K*Cin_pad).
        if ktaps == 1:
            xc = in_scr[pl.ds(0, lout), :]
        else:
            taps = []
            for k in range(ktaps):
                if stride == 1:
                    taps.append(in_scr[pl.ds(k, lout), :])
                else:
                    taps.append(in_scr[pl.ds(k, lout, stride), :])
            xc = jnp.concatenate(taps, axis=1)

        # One MXU matmul per layer, contraction = K*Cin_pad, f32 accumulate.
        y = jnp.dot(xc.astype(jnp.bfloat16), w_ref[...],
                    preferred_element_type=jnp.float32)
        y = y + b_ref[...]                        # bias add in f32
        if apply_silu:
            y = y * jax.nn.sigmoid(y)             # SiLU in f32 (EUP sigmoid)

        if i + 1 < n_layers:
            nxt = scratch[i + 1]
            npad = configs[i + 1][2]
            if npad > 0:
                nxt[...] = jnp.zeros_like(nxt)    # zero the next conv halo
            nxt[pl.ds(npad, lout), :] = y
        else:
            o_ref[...] = y.astype(o_ref.dtype)    # final logits (f32)


# ---------------------------------------------------------------------------
# Forward pass (mirrors Discriminator.forward) — single fused pallas_call.
# ---------------------------------------------------------------------------
def discriminator_forward(x, layers, to_logits):
    """x: (B, in_dim, L) f32.  Returns (B, 1, L_final) f32."""
    B, cin, L = x.shape

    # (weight, bias, stride, padding, apply_silu) in execution order.
    convs = [(layers[0][0], layers[0][1], 1, 3, True)]
    for w, b in layers[1:]:
        convs.append((w, b, 2, 1, True))
    w1, b1, w2, b2 = to_logits
    convs.append((w1, b1, 1, 0, True))
    convs.append((w2, b2, 1, 0, False))

    # ---- host-side prep: (L, C) layout, channels padded to multiples of 16 -
    cin_pad = _round_up(cin, 16)
    xt = jnp.transpose(x, (0, 2, 1))                              # (B, L, Cin)
    xp = jnp.pad(xt, ((0, 0), (0, 0), (0, cin_pad - cin))).astype(jnp.float32)

    inputs = [xp]
    configs = []
    scratch_shapes = []
    lin, prev_cpad = L, cin_pad
    flops = 0
    transcendentals = 0
    for (w, b, stride, padding, silu) in convs:
        cout, cin_l, k = w.shape
        cout_pad = _round_up(cout, 16)
        # (Cout, Cin, K) -> (K, Cin, Cout), pad, flatten to (K*Cin_pad, Cout_pad)
        wt = jnp.transpose(w, (2, 1, 0))
        wt = jnp.pad(wt, ((0, 0), (0, prev_cpad - cin_l), (0, cout_pad - cout)))
        wflat = wt.reshape(k * prev_cpad, cout_pad).astype(jnp.bfloat16)
        bp = jnp.pad(b, (0, cout_pad - cout)).reshape(1, cout_pad)
        inputs.append(wflat)
        inputs.append(bp.astype(jnp.float32))

        lout = (lin + 2 * padding - k) // stride + 1
        configs.append((k, stride, padding, lout, silu))
        scratch_shapes.append(
            pltpu.VMEM((lin + 2 * padding, prev_cpad), jnp.float32))
        flops += 2 * B * k * cin_l * cout * lout
        if silu:
            transcendentals += B * cout * lout
        lin, prev_cpad = lout, cout_pad

    lout_final = lin
    cout_final_pad = prev_cpad
    cout_final = convs[-1][0].shape[0]

    in_specs = [pl.BlockSpec((pl.Squeezed(), L, cin_pad), lambda i: (i, 0, 0))]
    for arr in inputs[1:]:
        in_specs.append(pl.BlockSpec(arr.shape, lambda i: (0, 0)))

    bytes_accessed = sum(int(a.size) * a.dtype.itemsize for a in inputs)
    bytes_accessed += B * lout_final * cout_final_pad * 4
    cost = pl.CostEstimate(flops=int(flops),
                           transcendentals=int(transcendentals),
                           bytes_accessed=int(bytes_accessed))

    kernel = functools.partial(_fused_disc_kernel, configs=tuple(configs))

    out = pl.pallas_call(
        kernel,
        out_shape=jax.ShapeDtypeStruct((B, lout_final, cout_final_pad),
                                       jnp.float32),
        grid=(B,),
        in_specs=in_specs,
        out_specs=pl.BlockSpec((pl.Squeezed(), lout_final, cout_final_pad),
                               lambda i: (i, 0, 0)),
        scratch_shapes=scratch_shapes,
        compiler_params=pltpu.CompilerParams(
            dimension_semantics=("parallel",),
            vmem_limit_bytes=32 * 1024 * 1024),
        cost_estimate=cost,
    )(*inputs)

    # Drop the channel padding of the final Conv1d(dim, 1, 4) and return the
    # PyTorch layout (B, 1, L_final).
    return jnp.transpose(out[:, :, :cout_final], (0, 2, 1))


# ---------------------------------------------------------------------------
# Parameter init (deterministic, PyTorch-default-like uniform(-1/sqrt(fan),.))
# ---------------------------------------------------------------------------
def init_discriminator_params(key, in_dim, h_dims):
    conv_specs = [(in_dim, h_dims[0], 7)]
    for a, c in zip(h_dims[:-1], h_dims[1:]):
        conv_specs.append((a, c, 4))

    layers = []
    for (cin, cout, k) in conv_specs:
        key, kw, kb = jax.random.split(key, 3)
        bound = 1.0 / (cin * k) ** 0.5
        w = jax.random.uniform(kw, (cout, cin, k), jnp.float32, -bound, bound)
        bb = jax.random.uniform(kb, (cout,), jnp.float32, -bound, bound)
        layers.append((w, bb))

    dim = h_dims[-1]
    key, k1, k2, k3, k4 = jax.random.split(key, 5)
    bound1 = 1.0 / dim ** 0.5
    w1 = jax.random.uniform(k1, (dim, dim, 1), jnp.float32, -bound1, bound1)
    b1 = jax.random.uniform(k2, (dim,), jnp.float32, -bound1, bound1)
    bound2 = 1.0 / (dim * 4) ** 0.5
    w2 = jax.random.uniform(k3, (1, dim, 4), jnp.float32, -bound2, bound2)
    b2 = jax.random.uniform(k4, (1,), jnp.float32, -bound2, bound2)
    return layers, (w1, b1, w2, b2)


# ---------------------------------------------------------------------------
# Pure-JAX (XLA) f32 reference for a correctness cross-check.
# ---------------------------------------------------------------------------
def _conv1d_ref(x, w, b, stride, padding):
    y = lax.conv_general_dilated(
        x, w, window_strides=(stride,), padding=[(padding, padding)],
        dimension_numbers=("NCH", "OIH", "NCH"))
    return y + b[None, :, None]


def discriminator_ref(x, layers, to_logits):
    w, b = layers[0]
    x = jax.nn.silu(_conv1d_ref(x, w, b, 1, 3))
    for w, b in layers[1:]:
        x = jax.nn.silu(_conv1d_ref(x, w, b, 2, 1))
    w1, b1, w2, b2 = to_logits
    x = jax.nn.silu(_conv1d_ref(x, w1, b1, 1, 0))
    return _conv1d_ref(x, w2, b2, 1, 0)


if __name__ == "__main__":
    in_dim = 4
    h_dims = (8, 16, 32)
    B, L = 2, 32

    key = jax.random.PRNGKey(0)
    key, kx = jax.random.split(key)
    x = jax.random.normal(kx, (B, in_dim, L), jnp.float32)

    layers, to_logits = init_discriminator_params(key, in_dim, h_dims)

    out = discriminator_forward(x, layers, to_logits)
    out = jax.block_until_ready(out)

    # expected shape: (B, 1, L / 2**(len(h_dims)-1) - 3) = (2, 1, 5)
    expected_len = L // (2 ** (len(h_dims) - 1)) - 3
    assert out.shape == (B, 1, expected_len), out.shape
    assert bool(jnp.all(jnp.isfinite(out)))

    # Cross-check against the f32 XLA reference (loose tolerance: the Pallas
    # kernel runs its MXU matmuls in bf16 with f32 accumulation).
    ref = discriminator_ref(x, layers, to_logits)
    assert jnp.allclose(out, ref, atol=5e-2, rtol=5e-2), (
        float(jnp.max(jnp.abs(out - ref))))

    print("KERNEL_OK")
</pallas_src>

<mosaic_0001>
module attributes {stable_mosaic.version = 11 : i64} {
  func.func @_fused_disc_kernel(%arg0: i32, %arg1: memref<1x32x16xf32, #tpu.memory_space<vmem>>, %arg2: memref<112x16xbf16, #tpu.memory_space<vmem>>, %arg3: memref<1x16xf32, #tpu.memory_space<vmem>>, %arg4: memref<64x16xbf16, #tpu.memory_space<vmem>>, %arg5: memref<1x16xf32, #tpu.memory_space<vmem>>, %arg6: memref<64x32xbf16, #tpu.memory_space<vmem>>, %arg7: memref<1x32xf32, #tpu.memory_space<vmem>>, %arg8: memref<32x32xbf16, #tpu.memory_space<vmem>>, %arg9: memref<1x32xf32, #tpu.memory_space<vmem>>, %arg10: memref<128x16xbf16, #tpu.memory_space<vmem>>, %arg11: memref<1x16xf32, #tpu.memory_space<vmem>>, %arg12: memref<1x5x16xf32, #tpu.memory_space<vmem>>, %arg13: memref<38x16xf32, #tpu.memory_space<vmem>>, %arg14: memref<34x16xf32, #tpu.memory_space<vmem>>, %arg15: memref<18x16xf32, #tpu.memory_space<vmem>>, %arg16: memref<8x32xf32, #tpu.memory_space<vmem>>, %arg17: memref<8x32xf32, #tpu.memory_space<vmem>>) attributes {dimension_semantics = [#tpu.dimension_semantics<parallel>], iteration_bounds = array<i64: 2>, scalar_prefetch = 0 : i64, scratch_operands = 5 : i64, tpu.core_type = #tpu.core_type<tc>, window_params = [{transform_indices = @transform_0, window_bounds = array<i64: 1, 32, 16>}, {pipeline_mode = #tpu.pipeline_mode<synchronous>, transform_indices = @transform_1, window_bounds = array<i64: 112, 16>}, {pipeline_mode = #tpu.pipeline_mode<synchronous>, transform_indices = @transform_2, window_bounds = array<i64: 1, 16>}, {pipeline_mode = #tpu.pipeline_mode<synchronous>, transform_indices = @transform_3, window_bounds = array<i64: 64, 16>}, {pipeline_mode = #tpu.pipeline_mode<synchronous>, transform_indices = @transform_4, window_bounds = array<i64: 1, 16>}, {pipeline_mode = #tpu.pipeline_mode<synchronous>, transform_indices = @transform_5, window_bounds = array<i64: 64, 32>}, {pipeline_mode = #tpu.pipeline_mode<synchronous>, transform_indices = @transform_6, window_bounds = array<i64: 1, 32>}, {pipeline_mode = #tpu.pipeline_mode<synchronous>, transform_indices = @transform_7, window_bounds = array<i64: 32, 32>}, {pipeline_mode = #tpu.pipeline_mode<synchronous>, transform_indices = @transform_8, window_bounds = array<i64: 1, 32>}, {pipeline_mode = #tpu.pipeline_mode<synchronous>, transform_indices = @transform_9, window_bounds = array<i64: 128, 16>}, {pipeline_mode = #tpu.pipeline_mode<synchronous>, transform_indices = @transform_10, window_bounds = array<i64: 1, 16>}, {transform_indices = @transform_11, window_bounds = array<i64: 1, 5, 16>}]} {
    %cst = arith.constant 0.000000e+00 : f32
    %0 = vector.broadcast %cst : f32 to vector<38x16xf32>
    %c0 = arith.constant 0 : index
    %c0_0 = arith.constant 0 : index
    %1 = vector.load %arg13[%c0, %c0_0] : memref<38x16xf32, #tpu.memory_space<vmem>>, vector<38x16xf32>
    tpu.vector_store %arg13[%c0, %c0_0], %0 {strides = array<i32>} : memref<38x16xf32, #tpu.memory_space<vmem>>, vector<38x16xf32>,
    %c0_1 = arith.constant 0 : index
    %c0_2 = arith.constant 0 : index
    %c0_3 = arith.constant 0 : index
    %2 = vector.load %arg1[%c0_1, %c0_2, %c0_3] : memref<1x32x16xf32, #tpu.memory_space<vmem>>, vector<1x32x16xf32>
    %3 = vector.shape_cast %2 : vector<1x32x16xf32> to vector<32x16xf32>
    %c3 = arith.constant 3 : index
    %c0_4 = arith.constant 0 : index
    %4 = vector.load %arg13[%c3, %c0_4] : memref<38x16xf32, #tpu.memory_space<vmem>>, vector<32x16xf32>
    tpu.vector_store %arg13[%c3, %c0_4], %3 {strides = array<i32>} : memref<38x16xf32, #tpu.memory_space<vmem>>, vector<32x16xf32>,
    %c0_5 = arith.constant 0 : index
    %c0_6 = arith.constant 0 : index
    %5 = vector.load %arg13[%c0_5, %c0_6] : memref<38x16xf32, #tpu.memory_space<vmem>>, vector<32x16xf32>
    %c1 = arith.constant 1 : index
    %c0_7 = arith.constant 0 : index
    %6 = vector.load %arg13[%c1, %c0_7] : memref<38x16xf32, #tpu.memory_space<vmem>>, vector<32x16xf32>
    %c2 = arith.constant 2 : index
    %c0_8 = arith.constant 0 : index
    %7 = vector.load %arg13[%c2, %c0_8] : memref<38x16xf32, #tpu.memory_space<vmem>>, vector<32x16xf32>
    %c3_9 = arith.constant 3 : index
    %c0_10 = arith.constant 0 : index
    %8 = vector.load %arg13[%c3_9, %c0_10] : memref<38x16xf32, #tpu.memory_space<vmem>>, vector<32x16xf32>
    %c4 = arith.constant 4 : index
    %c0_11 = arith.constant 0 : index
    %9 = vector.load %arg13[%c4, %c0_11] : memref<38x16xf32, #tpu.memory_space<vmem>>, vector<32x16xf32>
    %c5 = arith.constant 5 : index
    %c0_12 = arith.constant 0 : index
    %10 = vector.load %arg13[%c5, %c0_12] : memref<38x16xf32, #tpu.memory_space<vmem>>, vector<32x16xf32>
    %c6 = arith.constant 6 : index
    %c0_13 = arith.constant 0 : index
    %11 = vector.load %arg13[%c6, %c0_13] : memref<38x16xf32, #tpu.memory_space<vmem>>, vector<32x16xf32>
    %12 = tpu.concatenate %5, %6, %7, %8, %9, %10, %11 in 1 : vector<32x16xf32>, vector<32x16xf32>, vector<32x16xf32>, vector<32x16xf32>, vector<32x16xf32>, vector<32x16xf32>, vector<32x16xf32> -> vector<32x112xf32>
    %13 = arith.truncf %12 : vector<32x112xf32> to vector<32x112xbf16>
    %c0_14 = arith.constant 0 : index
    %c0_15 = arith.constant 0 : index
    %14 = vector.load %arg2[%c0_14, %c0_15] : memref<112x16xbf16, #tpu.memory_space<vmem>>, vector<112x16xbf16>
    %cst_16 = arith.constant dense<0.000000e+00> : vector<32x16xf32>
    %15 = tpu.matmul %13, %14, %cst_16 {dimension_numbers = #tpu.dot_dimension_numbers<[1], [0], [0], [1], [0, 0, 1, 1], [], []>} : vector<32x112xbf16>, vector<112x16xbf16>, vector<32x16xf32> -> vector<32x16xf32>
    %c0_17 = arith.constant 0 : index
    %c0_18 = arith.constant 0 : index
    %16 = vector.load %arg3[%c0_17, %c0_18] : memref<1x16xf32, #tpu.memory_space<vmem>>, vector<1x16xf32>
    %17 = vector.broadcast %16 : vector<1x16xf32> to vector<32x16xf32>
    %18 = arith.addf %15, %17 : vector<32x16xf32>
    %19 = arith.negf %18 : vector<32x16xf32>
    %20 = math.exp %19 : vector<32x16xf32>
    %cst_19 = arith.constant 1.000000e+00 : f32
    %21 = vector.broadcast %cst_19 : f32 to vector<32x16xf32>
    %22 = arith.addf %21, %20 : vector<32x16xf32>
    %23 = arith.divf %21, %22 : vector<32x16xf32>
    %24 = arith.mulf %18, %23 : vector<32x16xf32>
    %cst_20 = arith.constant 0.000000e+00 : f32
    %25 = vector.broadcast %cst_20 : f32 to vector<34x16xf32>
    %c0_21 = arith.constant 0 : index
    %c0_22 = arith.constant 0 : index
    %26 = vector.load %arg14[%c0_21, %c0_22] : memref<34x16xf32, #tpu.memory_space<vmem>>, vector<34x16xf32>
    tpu.vector_store %arg14[%c0_21, %c0_22], %25 {strides = array<i32>} : memref<34x16xf32, #tpu.memory_space<vmem>>, vector<34x16xf32>,
    %c1_23 = arith.constant 1 : index
    %c0_24 = arith.constant 0 : index
    %27 = vector.load %arg14[%c1_23, %c0_24] : memref<34x16xf32, #tpu.memory_space<vmem>>, vector<32x16xf32>
    tpu.vector_store %arg14[%c1_23, %c0_24], %24 {strides = array<i32>} : memref<34x16xf32, #tpu.memory_space<vmem>>, vector<32x16xf32>,
    %c0_25 = arith.constant 0 : index
    %c0_26 = arith.constant 0 : index
    %28 = tpu.strided_load %arg14[%c0_25, %c0_26] {strides = array<i32: 2, 1>} : memref<34x16xf32, #tpu.memory_space<vmem>>, vector<16x16xf32>
    %c1_27 = arith.constant 1 : index
    %c0_28 = arith.constant 0 : index
    %29 = tpu.strided_load %arg14[%c1_27, %c0_28] {strides = array<i32: 2, 1>} : memref<34x16xf32, #tpu.memory_space<vmem>>, vector<16x16xf32>
    %c2_29 = arith.constant 2 : index
    %c0_30 = arith.constant 0 : index
    %30 = tpu.strided_load %arg14[%c2_29, %c0_30] {strides = array<i32: 2, 1>} : memref<34x16xf32, #tpu.memory_space<vmem>>, vector<16x16xf32>
    %c3_31 = arith.constant 3 : index
    %c0_32 = arith.constant 0 : index
    %31 = tpu.strided_load %arg14[%c3_31, %c0_32] {strides = array<i32: 2, 1>} : memref<34x16xf32, #tpu.memory_space<vmem>>, vector<16x16xf32>
    %32 = tpu.concatenate %28, %29, %30, %31 in 1 : vector<16x16xf32>, vector<16x16xf32>, vector<16x16xf32>, vector<16x16xf32> -> vector<16x64xf32>
    %33 = arith.truncf %32 : vector<16x64xf32> to vector<16x64xbf16>
    %c0_33 = arith.constant 0 : index
    %c0_34 = arith.constant 0 : index
    %34 = vector.load %arg4[%c0_33, %c0_34] : memref<64x16xbf16, #tpu.memory_space<vmem>>, vector<64x16xbf16>
    %cst_35 = arith.constant dense<0.000000e+00> : vector<16x16xf32>
    %35 = tpu.matmul %33, %34, %cst_35 {dimension_numbers = #tpu.dot_dimension_numbers<[1], [0], [0], [1], [0, 0, 1, 1], [], []>} : vector<16x64xbf16>, vector<64x16xbf16>, vector<16x16xf32> -> vector<16x16xf32>
    %c0_36 = arith.constant 0 : index
    %c0_37 = arith.constant 0 : index
    %36 = vector.load %arg5[%c0_36, %c0_37] : memref<1x16xf32, #tpu.memory_space<vmem>>, vector<1x16xf32>
    %37 = vector.broadcast %36 : vector<1x16xf32> to vector<16x16xf32>
    %38 = arith.addf %35, %37 : vector<16x16xf32>
    %39 = arith.negf %38 : vector<16x16xf32>
    %40 = math.exp %39 : vector<16x16xf32>
    %cst_38 = arith.constant 1.000000e+00 : f32
    %41 = vector.broadcast %cst_38 : f32 to vector<16x16xf32>
    %42 = arith.addf %41, %40 : vector<16x16xf32>
    %43 = arith.divf %41, %42 : vector<16x16xf32>
    %44 = arith.mulf %38, %43 : vector<16x16xf32>
    %cst_39 = arith.constant 0.000000e+00 : f32
    %45 = vector.broadcast %cst_39 : f32 to vector<18x16xf32>
    %c0_40 = arith.constant 0 : index
    %c0_41 = arith.constant 0 : index
    %46 = vector.load %arg15[%c0_40, %c0_41] : memref<18x16xf32, #tpu.memory_space<vmem>>, vector<18x16xf32>
    tpu.vector_store %arg15[%c0_40, %c0_41], %45 {strides = array<i32>} : memref<18x16xf32, #tpu.memory_space<vmem>>, vector<18x16xf32>,
    %c1_42 = arith.constant 1 : index
    %c0_43 = arith.constant 0 : index
    %47 = vector.load %arg15[%c1_42, %c0_43] : memref<18x16xf32, #tpu.memory_space<vmem>>, vector<16x16xf32>
    tpu.vector_store %arg15[%c1_42, %c0_43], %44 {strides = array<i32>} : memref<18x16xf32, #tpu.memory_space<vmem>>, vector<16x16xf32>,
    %c0_44 = arith.constant 0 : index
    %c0_45 = arith.constant 0 : index
    %48 = tpu.strided_load %arg15[%c0_44, %c0_45] {strides = array<i32: 2, 1>} : memref<18x16xf32, #tpu.memory_space<vmem>>, vector<8x16xf32>
    %c1_46 = arith.constant 1 : index
    %c0_47 = arith.constant 0 : index
    %49 = tpu.strided_load %arg15[%c1_46, %c0_47] {strides = array<i32: 2, 1>} : memref<18x16xf32, #tpu.memory_space<vmem>>, vector<8x16xf32>
    %c2_48 = arith.constant 2 : index
    %c0_49 = arith.constant 0 : index
    %50 = tpu.strided_load %arg15[%c2_48, %c0_49] {strides = array<i32: 2, 1>} : memref<18x16xf32, #tpu.memory_space<vmem>>, vector<8x16xf32>
    %c3_50 = arith.constant 3 : index
    %c0_51 = arith.constant 0 : index
    %51 = tpu.strided_load %arg15[%c3_50, %c0_51] {strides = array<i32: 2, 1>} : memref<18x16xf32, #tpu.memory_space<vmem>>, vector<8x16xf32>
    %52 = tpu.concatenate %48, %49, %50, %51 in 1 : vector<8x16xf32>, vector<8x16xf32>, vector<8x16xf32>, vector<8x16xf32> -> vector<8x64xf32>
    %53 = arith.truncf %52 : vector<8x64xf32> to vector<8x64xbf16>
    %c0_52 = arith.constant 0 : index
    %c0_53 = arith.constant 0 : index
    %54 = vector.load %arg6[%c0_52, %c0_53] : memref<64x32xbf16, #tpu.memory_space<vmem>>, vector<64x32xbf16>
    %cst_54 = arith.constant dense<0.000000e+00> : vector<8x32xf32>
    %55 = tpu.matmul %53, %54, %cst_54 {dimension_numbers = #tpu.dot_dimension_numbers<[1], [0], [0], [1], [0, 0, 1, 1], [], []>} : vector<8x64xbf16>, vector<64x32xbf16>, vector<8x32xf32> -> vector<8x32xf32>
    %c0_55 = arith.constant 0 : index
    %c0_56 = arith.constant 0 : index
    %56 = vector.load %arg7[%c0_55, %c0_56] : memref<1x32xf32, #tpu.memory_space<vmem>>, vector<1x32xf32>
    %57 = vector.broadcast %56 : vector<1x32xf32> to vector<8x32xf32>
    %58 = arith.addf %55, %57 : vector<8x32xf32>
    %59 = arith.negf %58 : vector<8x32xf32>
    %60 = math.exp %59 : vector<8x32xf32>
    %cst_57 = arith.constant 1.000000e+00 : f32
    %61 = vector.broadcast %cst_57 : f32 to vector<8x32xf32>
    %62 = arith.addf %61, %60 : vector<8x32xf32>
    %63 = arith.divf %61, %62 : vector<8x32xf32>
    %64 = arith.mulf %58, %63 : vector<8x32xf32>
    %c0_58 = arith.constant 0 : index
    %c0_59 = arith.constant 0 : index
    %65 = vector.load %arg16[%c0_58, %c0_59] : memref<8x32xf32, #tpu.memory_space<vmem>>, vector<8x32xf32>
    tpu.vector_store %arg16[%c0_58, %c0_59], %64 {strides = array<i32>} : memref<8x32xf32, #tpu.memory_space<vmem>>, vector<8x32xf32>,
    %c0_60 = arith.constant 0 : index
    %c0_61 = arith.constant 0 : index
    %66 = vector.load %arg16[%c0_60, %c0_61] : memref<8x32xf32, #tpu.memory_space<vmem>>, vector<8x32xf32>
    %67 = arith.truncf %66 : vector<8x32xf32> to vector<8x32xbf16>
    %c0_62 = arith.constant 0 : index
    %c0_63 = arith.constant 0 : index
    %68 = vector.load %arg8[%c0_62, %c0_63] : memref<32x32xbf16, #tpu.memory_space<vmem>>, vector<32x32xbf16>
    %cst_64 = arith.constant dense<0.000000e+00> : vector<8x32xf32>
    %69 = tpu.matmul %67, %68, %cst_64 {dimension_numbers = #tpu.dot_dimension_numbers<[1], [0], [0], [1], [0, 0, 1, 1], [], []>} : vector<8x32xbf16>, vector<32x32xbf16>, vector<8x32xf32> -> vector<8x32xf32>
    %c0_65 = arith.constant 0 : index
    %c0_66 = arith.constant 0 : index
    %70 = vector.load %arg9[%c0_65, %c0_66] : memref<1x32xf32, #tpu.memory_space<vmem>>, vector<1x32xf32>
    %71 = vector.broadcast %70 : vector<1x32xf32> to vector<8x32xf32>
    %72 = arith.addf %69, %71 : vector<8x32xf32>
    %73 = arith.negf %72 : vector<8x32xf32>
    %74 = math.exp %73 : vector<8x32xf32>
    %cst_67 = arith.constant 1.000000e+00 : f32
    %75 = vector.broadcast %cst_67 : f32 to vector<8x32xf32>
    %76 = arith.addf %75, %74 : vector<8x32xf32>
    %77 = arith.divf %75, %76 : vector<8x32xf32>
    %78 = arith.mulf %72, %77 : vector<8x32xf32>
    %c0_68 = arith.constant 0 : index
    %c0_69 = arith.constant 0 : index
    %79 = vector.load %arg17[%c0_68, %c0_69] : memref<8x32xf32, #tpu.memory_space<vmem>>, vector<8x32xf32>
    tpu.vector_store %arg17[%c0_68, %c0_69], %78 {strides = array<i32>} : memref<8x32xf32, #tpu.memory_space<vmem>>, vector<8x32xf32>,
    %c0_70 = arith.constant 0 : index
    %c0_71 = arith.constant 0 : index
    %80 = vector.load %arg17[%c0_70, %c0_71] : memref<8x32xf32, #tpu.memory_space<vmem>>, vector<5x32xf32>
    %c1_72 = arith.constant 1 : index
    %c0_73 = arith.constant 0 : index
    %81 = vector.load %arg17[%c1_72, %c0_73] : memref<8x32xf32, #tpu.memory_space<vmem>>, vector<5x32xf32>
    %c2_74 = arith.constant 2 : index
    %c0_75 = arith.constant 0 : index
    %82 = vector.load %arg17[%c2_74, %c0_75] : memref<8x32xf32, #tpu.memory_space<vmem>>, vector<5x32xf32>
    %c3_76 = arith.constant 3 : index
    %c0_77 = arith.constant 0 : index
    %83 = vector.load %arg17[%c3_76, %c0_77] : memref<8x32xf32, #tpu.memory_space<vmem>>, vector<5x32xf32>
    %84 = tpu.concatenate %80, %81, %82, %83 in 1 : vector<5x32xf32>, vector<5x32xf32>, vector<5x32xf32>, vector<5x32xf32> -> vector<5x128xf32>
    %85 = arith.truncf %84 : vector<5x128xf32> to vector<5x128xbf16>
    %c0_78 = arith.constant 0 : index
    %c0_79 = arith.constant 0 : index
    %86 = vector.load %arg10[%c0_78, %c0_79] : memref<128x16xbf16, #tpu.memory_space<vmem>>, vector<128x16xbf16>
    %cst_80 = arith.constant dense<0.000000e+00> : vector<5x16xf32>
    %87 = tpu.matmul %85, %86, %cst_80 {dimension_numbers = #tpu.dot_dimension_numbers<[1], [0], [0], [1], [0, 0, 1, 1], [], []>} : vector<5x128xbf16>, vector<128x16xbf16>, vector<5x16xf32> -> vector<5x16xf32>
    %c0_81 = arith.constant 0 : index
    %c0_82 = arith.constant 0 : index
    %88 = vector.load %arg11[%c0_81, %c0_82] : memref<1x16xf32, #tpu.memory_space<vmem>>, vector<1x16xf32>
    %89 = vector.broadcast %88 : vector<1x16xf32> to vector<5x16xf32>
    %90 = arith.addf %87, %89 : vector<5x16xf32>
    %c0_83 = arith.constant 0 : index
    %c0_84 = arith.constant 0 : index
    %c0_85 = arith.constant 0 : index
    %91 = vector.load %arg12[%c0_83, %c0_84, %c0_85] : memref<1x5x16xf32, #tpu.memory_space<vmem>>, vector<1x5x16xf32>
    %92 = vector.shape_cast %91 : vector<1x5x16xf32> to vector<5x16xf32>
    %93 = vector.shape_cast %90 : vector<5x16xf32> to vector<1x5x16xf32>
    tpu.vector_store %arg12[%c0_83, %c0_84, %c0_85], %93 {strides = array<i32>} : memref<1x5x16xf32, #tpu.memory_space<vmem>>, vector<1x5x16xf32>,
    return
  }
  func.func @transform_0(%arg0: i32) -> (i32, i32, i32) {
    %c0_i32 = arith.constant 0 : i32
    %c0_i32_0 = arith.constant 0 : i32
    %c0_i32_1 = arith.constant 0 : i32
    return %arg0, %c0_i32, %c0_i32_0 : i32, i32, i32
  }
  func.func @transform_1(%arg0: i32) -> (i32, i32) {
    %c0_i32 = arith.constant 0 : i32
    %c0_i32_0 = arith.constant 0 : i32
    %c0_i32_1 = arith.constant 0 : i32
    return %c0_i32, %c0_i32_0 : i32, i32
  }
  func.func @transform_2(%arg0: i32) -> (i32, i32) {
    %c0_i32 = arith.constant 0 : i32
    %c0_i32_0 = arith.constant 0 : i32
    %c0_i32_1 = arith.constant 0 : i32
    return %c0_i32, %c0_i32_0 : i32, i32
  }
  func.func @transform_3(%arg0: i32) -> (i32, i32) {
    %c0_i32 = arith.constant 0 : i32
    %c0_i32_0 = arith.constant 0 : i32
    %c0_i32_1 = arith.constant 0 : i32
    return %c0_i32, %c0_i32_0 : i32, i32
  }
  func.func @transform_4(%arg0: i32) -> (i32, i32) {
    %c0_i32 = arith.constant 0 : i32
    %c0_i32_0 = arith.constant 0 : i32
    %c0_i32_1 = arith.constant 0 : i32
    return %c0_i32, %c0_i32_0 : i32, i32
  }
  func.func @transform_5(%arg0: i32) -> (i32, i32) {
    %c0_i32 = arith.constant 0 : i32
    %c0_i32_0 = arith.constant 0 : i32
    %c0_i32_1 = arith.constant 0 : i32
    return %c0_i32, %c0_i32_0 : i32, i32
  }
  func.func @transform_6(%arg0: i32) -> (i32, i32) {
    %c0_i32 = arith.constant 0 : i32
    %c0_i32_0 = arith.constant 0 : i32
    %c0_i32_1 = arith.constant 0 : i32
    return %c0_i32, %c0_i32_0 : i32, i32
  }
  func.func @transform_7(%arg0: i32) -> (i32, i32) {
    %c0_i32 = arith.constant 0 : i32
    %c0_i32_0 = arith.constant 0 : i32
    %c0_i32_1 = arith.constant 0 : i32
    return %c0_i32, %c0_i32_0 : i32, i32
  }
  func.func @transform_8(%arg0: i32) -> (i32, i32) {
    %c0_i32 = arith.constant 0 : i32
    %c0_i32_0 = arith.constant 0 : i32
    %c0_i32_1 = arith.constant 0 : i32
    return %c0_i32, %c0_i32_0 : i32, i32
  }
  func.func @transform_9(%arg0: i32) -> (i32, i32) {
    %c0_i32 = arith.constant 0 : i32
    %c0_i32_0 = arith.constant 0 : i32
    %c0_i32_1 = arith.constant 0 : i32
    return %c0_i32, %c0_i32_0 : i32, i32
  }
  func.func @transform_10(%arg0: i32) -> (i32, i32) {
    %c0_i32 = arith.constant 0 : i32
    %c0_i32_0 = arith.constant 0 : i32
    %c0_i32_1 = arith.constant 0 : i32
    return %c0_i32, %c0_i32_0 : i32, i32
  }
  func.func @transform_11(%arg0: i32) -> (i32, i32, i32) {
    %c0_i32 = arith.constant 0 : i32
    %c0_i32_0 = arith.constant 0 : i32
    %c0_i32_1 = arith.constant 0 : i32
    return %arg0, %c0_i32, %c0_i32_0 : i32, i32, i32
  }
}

</mosaic_0001>

<llo_original>
// kernel: tpu_custom_call.1
$region0: #{tpu_custom_call.1}
  #allocation0 [shape = 'u32[]', space=smem, size = 0x4, offset = 0x4, fixed_abs, tag = 'smem constant byte address 0x4 - core index']
  #allocation1 [shape = 'u32[144,128]{1,0:T(1,128)}', space=vmem, size = 0x12000, scoped, tag = 'internal scratch']
  #allocation2 [shape = 'f32[38,16]{1,0:T(8,128)}', space=vmem, size = 0x5000, scoped, tag = 'scratch operand']
  #allocation3 [shape = 'f32[34,16]{1,0:T(8,128)}', space=vmem, size = 0x5000, scoped, tag = 'scratch operand']
  #allocation4 [shape = 'f32[18,16]{1,0:T(8,128)}', space=vmem, size = 0x3000, scoped, tag = 'scratch operand']
  #allocation5 [shape = 'f32[8,32]{1,0:T(8,128)}', space=vmem, size = 0x1000, scoped, tag = 'scratch operand']
  #allocation6 [shape = 'f32[8,32]{1,0:T(8,128)}', space=vmem, size = 0x1000, scoped, tag = 'scratch operand']
  %s0 = inlined_call_operand.vmem [shape: f32[2,32,16], index: 0, kind: input, shape index: {}]
  %s1 = inlined_call_operand.vmem [shape: bf16[112,16], index: 1, kind: input, shape index: {}]
  %s2 = inlined_call_operand.vmem [shape: f32[1,16], index: 2, kind: input, shape index: {}]
  %s3 = inlined_call_operand.vmem [shape: bf16[64,16], index: 3, kind: input, shape index: {}]
  %s4 = inlined_call_operand.vmem [shape: f32[1,16], index: 4, kind: input, shape index: {}]
  %s5 = inlined_call_operand.vmem [shape: bf16[64,32], index: 5, kind: input, shape index: {}]
  %s6 = inlined_call_operand.vmem [shape: f32[1,32], index: 6, kind: input, shape index: {}]
  %s7 = inlined_call_operand.vmem [shape: bf16[32,32], index: 7, kind: input, shape index: {}]
  %s8 = inlined_call_operand.vmem [shape: f32[1,32], index: 8, kind: input, shape index: {}]
  %s9 = inlined_call_operand.vmem [shape: bf16[128,16], index: 9, kind: input, shape index: {}]
  %s10 = inlined_call_operand.vmem [shape: f32[1,16], index: 10, kind: input, shape index: {}]
  %s11 = inlined_call_operand.vmem [shape: f32[2,5,16], index: 11, kind: output, shape index: {}]
  %s12 = sld [smem:[#allocation0]]
  $region77: #{tpu_custom_call.1} parent=0
    _
  %s14 = ssub.s32 1, %s12
  %s15 = scalar_select 0, %s14, %s12
  loop: start=0, step=1, limit=4
  $region2: #{tpu_custom_call.1} parent=0 // loop_pre_header
    _
  $region3: #{tpu_custom_call.1} parent=0 // loop_header
    %s17 = sphi 0, %s21
    %p18 = scmp.ge.s32.totalorder %s17, 4
    %s27 = sphi 0, %s29
    %s30 = sphi 0, %s27
    %s31 = sphi 0, %s30
    %s47 = sphi 0, %s31
    %s51 = sphi 0, %s51
    %s53 = sphi 0, %s51
    %s54 = sphi 0, %s53
    %s68 = sphi 0, %s54
    %s72 = sphi 0, %s72
    %s74 = sphi 0, %s72
    %s75 = sphi 0, %s74
    %s89 = sphi 0, %s75
    %s93 = sphi 0, %s93
    %s95 = sphi 0, %s93
    %s96 = sphi 0, %s95
    %s110 = sphi 0, %s96
    %s114 = sphi 0, %s114
    %s116 = sphi 0, %s114
    %s117 = sphi 0, %s116
    %s131 = sphi 0, %s117
    %s135 = sphi 0, %s135
    %s137 = sphi 0, %s135
    %s138 = sphi 0, %s137
    %s152 = sphi 0, %s138
    %s156 = sphi 0, %s156
    %s158 = sphi 0, %s156
    %s159 = sphi 0, %s158
    %s173 = sphi 0, %s159
    %s177 = sphi 0, %s177
    %s179 = sphi 0, %s177
    %s180 = sphi 0, %s179
    %s194 = sphi 0, %s180
    %s198 = sphi 0, %s198
    %s200 = sphi 0, %s198
    %s201 = sphi 0, %s200
    %s215 = sphi 0, %s201
    %s219 = sphi 0, %s219
    %s221 = sphi 0, %s219
    %s222 = sphi 0, %s221
    %s236 = sphi 0, %s222
    %s240 = sphi 0, %s240
    %s242 = sphi 0, %s240
    %s243 = sphi 0, %s242
    %s257 = sphi 0, %s243
    %s263 = sphi 0, %s265
    %s266 = sphi 0, %s263
    %s267 = sphi 0, %s266
    %s283 = sphi 0, %s267
  $region4: #{tpu_custom_call.1} parent=0 // loop_header_branch
    %20 = sbr.rel (%p18) target = $region8
  $region5: #{tpu_custom_call.1} parent=0 // loop_body
    %s22 = ssub.s32 %s17, 1
    %s23 = ssub.s32 %s17, 2
    %s24 = sadd.s32 %s17, 1
    %s25 = ssub.s32 %s17, %s24
    %p26 = scmp.eq.s32.totalorder %s25, 0
    %s28 = sadd.s32 %s27, 1
    %s29 = scalar_select %p26, %s27, %s28
    %p32 = pneg %p26
    %p33 = scmp.eq.s32.totalorder %s17, 1
    %p34 = por %p32, %p33
    %p35 = scmp.ne.s32.totalorder %s27, %s30
    %p36 = scmp.eq.s32.totalorder %s17, 0
    %p37 = por %p35, %p36
    %p38 = scmp.ne.s32.totalorder %s27, %s30
    %p39 = scmp.eq.s32.totalorder %s22, 1
    %p40 = por %p38, %p39
    %p41 = scmp.ne.s32.totalorder %s30, %s31
    %p42 = scmp.eq.s32.totalorder %s22, 0
    %p43 = por %p41, %p42
    %p44 = scmp.ne.s32.totalorder %s30, %s31
    %p45 = scmp.eq.s32.totalorder %s23, 1
    %p46 = por %p44, %p45
    %p48 = scmp.ne.s32.totalorder %s31, %s47
    %p49 = scmp.eq.s32.totalorder %s23, 0
    %p50 = por %p48, %p49
    %s52 = sadd.s32 %s51, 1
    %p55 = scmp.eq.s32.totalorder %s17, 1
    %p56 = scmp.ne.s32.totalorder %s51, %s53
    %p57 = scmp.eq.s32.totalorder %s17, 0
    %p58 = por %p56, %p57
    %p59 = scmp.ne.s32.totalorder %s51, %s53
    %p60 = scmp.eq.s32.totalorder %s22, 1
    %p61 = por %p59, %p60
    %p62 = scmp.ne.s32.totalorder %s53, %s54
    %p63 = scmp.eq.s32.totalorder %s22, 0
    %p64 = por %p62, %p63
    %p65 = scmp.ne.s32.totalorder %s53, %s54
    %p66 = scmp.eq.s32.totalorder %s23, 1
    %p67 = por %p65, %p66
    %p69 = scmp.ne.s32.totalorder %s54, %s68
    %p70 = scmp.eq.s32.totalorder %s23, 0
    %p71 = por %p69, %p70
    %s73 = sadd.s32 %s72, 1
    %p76 = scmp.eq.s32.totalorder %s17, 1
    %p77 = scmp.ne.s32.totalorder %s72, %s74
    %p78 = scmp.eq.s32.totalorder %s17, 0
    %p79 = por %p77, %p78
    %p80 = scmp.ne.s32.totalorder %s72, %s74
    %p81 = scmp.eq.s32.totalorder %s22, 1
    %p82 = por %p80, %p81
    %p83 = scmp.ne.s32.totalorder %s74, %s75
    %p84 = scmp.eq.s32.totalorder %s22, 0
    %p85 = por %p83, %p84
    %p86 = scmp.ne.s32.totalorder %s74, %s75
    %p87 = scmp.eq.s32.totalorder %s23, 1
    %p88 = por %p86, %p87
    %p90 = scmp.ne.s32.totalorder %s75, %s89
    %p91 = scmp.eq.s32.totalorder %s23, 0
    %p92 = por %p90, %p91
    %s94 = sadd.s32 %s93, 1
    %p97 = scmp.eq.s32.totalorder %s17, 1
    %p98 = scmp.ne.s32.totalorder %s93, %s95
    %p99 = scmp.eq.s32.totalorder %s17, 0
    %p100 = por %p98, %p99
    %p101 = scmp.ne.s32.totalorder %s93, %s95
    %p102 = scmp.eq.s32.totalorder %s22, 1
    %p103 = por %p101, %p102
    %p104 = scmp.ne.s32.totalorder %s95, %s96
    %p105 = scmp.eq.s32.totalorder %s22, 0
    %p106 = por %p104, %p105
    %p107 = scmp.ne.s32.totalorder %s95, %s96
    %p108 = scmp.eq.s32.totalorder %s23, 1
    %p109 = por %p107, %p108
    %p111 = scmp.ne.s32.totalorder %s96, %s110
    %p112 = scmp.eq.s32.totalorder %s23, 0
    %p113 = por %p111, %p112
    %s115 = sadd.s32 %s114, 1
    %p118 = scmp.eq.s32.totalorder %s17, 1
    %p119 = scmp.ne.s32.totalorder %s114, %s116
    %p120 = scmp.eq.s32.totalorder %s17, 0
    %p121 = por %p119, %p120
    %p122 = scmp.ne.s32.totalorder %s114, %s116
    %p123 = scmp.eq.s32.totalorder %s22, 1
    %p124 = por %p122, %p123
    %p125 = scmp.ne.s32.totalorder %s116, %s117
    %p126 = scmp.eq.s32.totalorder %s22, 0
    %p127 = por %p125, %p126
    %p128 = scmp.ne.s32.totalorder %s116, %s117
    %p129 = scmp.eq.s32.totalorder %s23, 1
    %p130 = por %p128, %p129
    %p132 = scmp.ne.s32.totalorder %s117, %s131
    %p133 = scmp.eq.s32.totalorder %s23, 0
    %p134 = por %p132, %p133
    %s136 = sadd.s32 %s135, 1
    %p139 = scmp.eq.s32.totalorder %s17, 1
    %p140 = scmp.ne.s32.totalorder %s135, %s137
    %p141 = scmp.eq.s32.totalorder %s17, 0
    %p142 = por %p140, %p141
    %p143 = scmp.ne.s32.totalorder %s135, %s137
    %p144 = scmp.eq.s32.totalorder %s22, 1
    %p145 = por %p143, %p144
    %p146 = scmp.ne.s32.totalorder %s137, %s138
    %p147 = scmp.eq.s32.totalorder %s22, 0
    %p148 = por %p146, %p147
    %p149 = scmp.ne.s32.totalorder %s137, %s138
    %p150 = scmp.eq.s32.totalorder %s23, 1
    %p151 = por %p149, %p150
    %p153 = scmp.ne.s32.totalorder %s138, %s152
    %p154 = scmp.eq.s32.totalorder %s23, 0
    %p155 = por %p153, %p154
    %s157 = sadd.s32 %s156, 1
    %p160 = scmp.eq.s32.totalorder %s17, 1
    %p161 = scmp.ne.s32.totalorder %s156, %s158
    %p162 = scmp.eq.s32.totalorder %s17, 0
    %p163 = por %p161, %p162
    %p164 = scmp.ne.s32.totalorder %s156, %s158
    %p165 = scmp.eq.s32.totalorder %s22, 1
    %p166 = por %p164, %p165
    %p167 = scmp.ne.s32.totalorder %s158, %s159
    %p168 = scmp.eq.s32.totalorder %s22, 0
    %p169 = por %p167, %p168
    %p170 = scmp.ne.s32.totalorder %s158, %s159
    %p171 = scmp.eq.s32.totalorder %s23, 1
    %p172 = por %p170, %p171
    %p174 = scmp.ne.s32.totalorder %s159, %s173
    %p175 = scmp.eq.s32.totalorder %s23, 0
    %p176 = por %p174, %p175
    %s178 = sadd.s32 %s177, 1
    %p181 = scmp.eq.s32.totalorder %s17, 1
    %p182 = scmp.ne.s32.totalorder %s177, %s179
    %p183 = scmp.eq.s32.totalorder %s17, 0
    %p184 = por %p182, %p183
    %p185 = scmp.ne.s32.totalorder %s177, %s179
    %p186 = scmp.eq.s32.totalorder %s22, 1
    %p187 = por %p185, %p186
    %p188 = scmp.ne.s32.totalorder %s179, %s180
    %p189 = scmp.eq.s32.totalorder %s22, 0
    %p190 = por %p188, %p189
    %p191 = scmp.ne.s32.totalorder %s179, %s180
    %p192 = scmp.eq.s32.totalorder %s23, 1
    %p193 = por %p191, %p192
    %p195 = scmp.ne.s32.totalorder %s180, %s194
    %p196 = scmp.eq.s32.totalorder %s23, 0
    %p197 = por %p195, %p196
    %s199 = sadd.s32 %s198, 1
    %p202 = scmp.eq.s32.totalorder %s17, 1
    %p203 = scmp.ne.s32.totalorder %s198, %s200
    %p204 = scmp.eq.s32.totalorder %s17, 0
    %p205 = por %p203, %p204
    %p206 = scmp.ne.s32.totalorder %s198, %s200
    %p207 = scmp.eq.s32.totalorder %s22, 1
    %p208 = por %p206, %p207
    %p209 = scmp.ne.s32.totalorder %s200, %s201
    %p210 = scmp.eq.s32.totalorder %s22, 0
    %p211 = por %p209, %p210
    %p212 = scmp.ne.s32.totalorder %s200, %s201
    %p213 = scmp.eq.s32.totalorder %s23, 1
    %p214 = por %p212, %p213
    %p216 = scmp.ne.s32.totalorder %s201, %s215
    %p217 = scmp.eq.s32.totalorder %s23, 0
    %p218 = por %p216, %p217
    %s220 = sadd.s32 %s219, 1
    %p223 = scmp.eq.s32.totalorder %s17, 1
    %p224 = scmp.ne.s32.totalorder %s219, %s221
    %p225 = scmp.eq.s32.totalorder %s17, 0
    %p226 = por %p224, %p225
    %p227 = scmp.ne.s32.totalorder %s219, %s221
    %p228 = scmp.eq.s32.totalorder %s22, 1
    %p229 = por %p227, %p228
    %p230 = scmp.ne.s32.totalorder %s221, %s222
    %p231 = scmp.eq.s32.totalorder %s22, 0
    %p232 = por %p230, %p231
    %p233 = scmp.ne.s32.totalorder %s221, %s222
    %p234 = scmp.eq.s32.totalorder %s23, 1
    %p235 = por %p233, %p234
    %p237 = scmp.ne.s32.totalorder %s222, %s236
    %p238 = scmp.eq.s32.totalorder %s23, 0
    %p239 = por %p237, %p238
    %s241 = sadd.s32 %s240, 1
    %p244 = scmp.eq.s32.totalorder %s17, 1
    %p245 = scmp.ne.s32.totalorder %s240, %s242
    %p246 = scmp.eq.s32.totalorder %s17, 0
    %p247 = por %p245, %p246
    %p248 = scmp.ne.s32.totalorder %s240, %s242
    %p249 = scmp.eq.s32.totalorder %s22, 1
    %p250 = por %p248, %p249
    %p251 = scmp.ne.s32.totalorder %s242, %s243
    %p252 = scmp.eq.s32.totalorder %s22, 0
    %p253 = por %p251, %p252
    %p254 = scmp.ne.s32.totalorder %s242, %s243
    %p255 = scmp.eq.s32.totalorder %s23, 1
    %p256 = por %p254, %p255
    %p258 = scmp.ne.s32.totalorder %s243, %s257
    %p259 = scmp.eq.s32.totalorder %s23, 0
    %p260 = por %p258, %p259
    %s261 = ssub.s32 %s17, %s24
    %p262 = scmp.eq.s32.totalorder %s261, 0
    %s264 = sadd.s32 %s263, 1
    %s265 = scalar_select %p262, %s263, %s264
    %p268 = pneg %p262
    %p269 = scmp.eq.s32.totalorder %s17, 1
    %p270 = por %p268, %p269
    %p271 = scmp.ne.s32.totalorder %s263, %s266
    %p272 = scmp.eq.s32.totalorder %s17, 0
    %p273 = por %p271, %p272
    %p274 = scmp.ne.s32.totalorder %s263, %s266
    %p275 = scmp.eq.s32.totalorder %s22, 1
    %p276 = por %p274, %p275
    %p277 = scmp.ne.s32.totalorder %s266, %s267
    %p278 = scmp.eq.s32.totalorder %s22, 0
    %p279 = por %p277, %p278
    %p280 = scmp.ne.s32.totalorder %s266, %s267
    %p281 = scmp.eq.s32.totalorder %s23, 1
    %p282 = por %p280, %p281
    %p284 = scmp.ne.s32.totalorder %s267, %s283
    %p285 = scmp.eq.s32.totalorder %s23, 0
    %p286 = por %p284, %p285
    %p287 = scmp.le.s32.totalorder 1, %s17
    %p288 = scmp.lt.s32.totalorder %s17, 3
    %p289 = pnand %p287, %p288
    %p290 = pneg %p289
    // Predicated region
    $region9: #{tpu_custom_call.1} parent=5 // pred_check
      _
    $region10: #{tpu_custom_call.1} parent=5 // pred_check_branch
      %292 = sbr.rel (%p289) target = $region12
    $region11: #{tpu_custom_call.1} parent=5 // pred_region
      %s293 = ssub.s32 %s17, 1
      // Predicated region
      $region13: #{tpu_custom_call.1} parent=11 // pred_check
        %p294 = pneg %p64
      $region14: #{tpu_custom_call.1} parent=11 // pred_check_branch
        %296 = sbr.rel (%p294) target = $region16
      $region15: #{tpu_custom_call.1} parent=11 // pred_region
        _
      $region16: #{tpu_custom_call.1} parent=11 // pred_fallthru
        _
      // Predicated region
      $region17: #{tpu_custom_call.1} parent=11 // pred_check
        %p297 = pneg %p85
      $region18: #{tpu_custom_call.1} parent=11 // pred_check_branch
        %299 = sbr.rel (%p297) target = $region20
      $region19: #{tpu_custom_call.1} parent=11 // pred_region
        _
      $region20: #{tpu_custom_call.1} parent=11 // pred_fallthru
        _
      // Predicated region
      $region21: #{tpu_custom_call.1} parent=11 // pred_check
        %p300 = pneg %p106
      $region22: #{tpu_custom_call.1} parent=11 // pred_check_branch
        %302 = sbr.rel (%p300) target = $region24
      $region23: #{tpu_custom_call.1} parent=11 // pred_region
        _
      $region24: #{tpu_custom_call.1} parent=11 // pred_fallthru
        _
      // Predicated region
      $region25: #{tpu_custom_call.1} parent=11 // pred_check
        %p303 = pneg %p127
      $region26: #{tpu_custom_call.1} parent=11 // pred_check_branch
        %305 = sbr.rel (%p303) target = $region28
      $region27: #{tpu_custom_call.1} parent=11 // pred_region
        _
      $region28: #{tpu_custom_call.1} parent=11 // pred_fallthru
        _
      // Predicated region
      $region29: #{tpu_custom_call.1} parent=11 // pred_check
        %p306 = pneg %p148
      $region30: #{tpu_custom_call.1} parent=11 // pred_check_branch
        %308 = sbr.rel (%p306) target = $region32
      $region31: #{tpu_custom_call.1} parent=11 // pred_region
        _
      $region32: #{tpu_custom_call.1} parent=11 // pred_fallthru
        _
      // Predicated region
      $region33: #{tpu_custom_call.1} parent=11 // pred_check
        %p309 = pneg %p169
      $region34: #{tpu_custom_call.1} parent=11 // pred_check_branch
        %311 = sbr.rel (%p309) target = $region36
      $region35: #{tpu_custom_call.1} parent=11 // pred_region
        _
      $region36: #{tpu_custom_call.1} parent=11 // pred_fallthru
        _
      // Predicated region
      $region37: #{tpu_custom_call.1} parent=11 // pred_check
        %p312 = pneg %p190
      $region38: #{tpu_custom_call.1} parent=11 // pred_check_branch
        %314 = sbr.rel (%p312) target = $region40
      $region39: #{tpu_custom_call.1} parent=11 // pred_region
        _
      $region40: #{tpu_custom_call.1} parent=11 // pred_fallthru
        _
      // Predicated region
      $region41: #{tpu_custom_call.1} parent=11 // pred_check
        %p315 = pneg %p211
      $region42: #{tpu_custom_call.1} parent=11 // pred_check_branch
        %317 = sbr.rel (%p315) target = $region44
      $region43: #{tpu_custom_call.1} parent=11 // pred_region
        _
      $region44: #{tpu_custom_call.1} parent=11 // pred_fallthru
        _
      // Predicated region
      $region45: #{tpu_custom_call.1} parent=11 // pred_check
        %p318 = pneg %p232
      $region46: #{tpu_custom_call.1} parent=11 // pred_check_branch
        %320 = sbr.rel (%p318) target = $region48
      $region47: #{tpu_custom_call.1} parent=11 // pred_region
        _
      $region48: #{tpu_custom_call.1} parent=11 // pred_fallthru
        _
      // Predicated region
      $region49: #{tpu_custom_call.1} parent=11 // pred_check
        %p321 = pneg %p253
      $region50: #{tpu_custom_call.1} parent=11 // pred_check_branch
        %323 = sbr.rel (%p321) target = $region52
      $region51: #{tpu_custom_call.1} parent=11 // pred_region
        _
      $region52: #{tpu_custom_call.1} parent=11 // pred_fallthru
        _
    $region12: #{tpu_custom_call.1} parent=5 // pred_fallthru
      _
    %p324 = scmp.lt.s32.totalorder %s17, 2
    // Predicated region
    $region53: #{tpu_custom_call.1} parent=5 // pred_check
      %p325 = pneg %p324
    $region54: #{tpu_custom_call.1} parent=5 // pred_check_branch
      %327 = sbr.rel (%p325) target = $region56
    $region55: #{tpu_custom_call.1} parent=5 // pred_region
      // Predicated region
      $region57: #{tpu_custom_call.1} parent=55 // pred_check
        %p328 = pneg %p37
      $region58: #{tpu_custom_call.1} parent=55 // pred_check_branch
        %330 = sbr.rel (%p328) target = $region60
      $region59: #{tpu_custom_call.1} parent=55 // pred_region
        %p331 = scmp.lt.s32.totalorder %s17, 1
        %s332 = scalar_select %p331, %s17, 1
        %s333 = smul.addr %s332, 4
        %s334 = smul.addr %s333, 8
        %s335 = scalar_lea.vmem %s0, %s334
      $region60: #{tpu_custom_call.1} parent=55 // pred_fallthru
        _
    $region56: #{tpu_custom_call.1} parent=5 // pred_fallthru
      _
    %p336 = scmp.le.s32.totalorder 1, %s17
    %p337 = scmp.lt.s32.totalorder %s17, 3
    %p338 = pnand %p336, %p337
    %p339 = pneg %p338
    // Predicated region
    $region61: #{tpu_custom_call.1} parent=5 // pred_check
      _
    $region62: #{tpu_custom_call.1} parent=5 // pred_check_branch
      %341 = sbr.rel (%p338) target = $region64
    $region63: #{tpu_custom_call.1} parent=5 // pred_region
      %s342 = ssub.s32 %s17, 1
      %p343 = scmp.lt.s32.totalorder %s22, 1
      %s344 = scalar_select %p343, %s22, 1
      %s345 = smul.addr %s344, 4
      %s346 = smul.addr %s345, 8
      %s347 = scalar_lea.vmem %s0, %s346
      %p348 = pneg %p43
      %p349 = pneg %p40
      %p350 = pneg %p64
      %p351 = pneg %p61
      %p352 = pneg %p85
      %p353 = pneg %p82
      %p354 = pneg %p106
      %p355 = pneg %p103
      %p356 = pneg %p127
      %p357 = pneg %p124
      %p358 = pneg %p148
      %p359 = pneg %p145
      %p360 = pneg %p169
      %p361 = pneg %p166
      %p362 = pneg %p190
      %p363 = pneg %p187
      %p364 = pneg %p211
      %p365 = pneg %p208
      %p366 = pneg %p232
      %p367 = pneg %p229
      %p368 = pneg %p253
      %p369 = pneg %p250
      %p370 = pneg %p279
      %p371 = pneg %p276
      %p372 = scmp.lt.s32.totalorder %s22, 1
      %s373 = scalar_select %p372, %s22, 1
      %s374 = smul.addr %s373, 8
      %s375 = scalar_lea.vmem %s11, %s374
      %p376 = scmp.lt.s32.totalorder %s22, 1
      %s377 = scalar_select %p376, %s22, 1
      %s378 = smul.addr %s377, 4
      %s379 = smul.addr %s378, 8
      %s380 = scalar_lea.vmem %s0, %s379
      %p381 = scmp.lt.s32.totalorder %s22, 1
      %s382 = scalar_select %p381, %s22, 1
      %s383 = smul.addr %s382, 8
      %s384 = scalar_lea.vmem %s11, %s383
      %vm386 = vcmask 130048
      %387 = vst.msk [vmem:[#allocation2] sm:$0xff] %vm386, 0.0
      %388 = vst.msk [vmem:[#allocation2 + $0x8] sm:$0xff] %vm386, 0.0
      %389 = vst.msk [vmem:[#allocation2 + $0x10] sm:$0xff] %vm386, 0.0
      %390 = vst.msk [vmem:[#allocation2 + $0x18] sm:$0xff] %vm386, 0.0
      %vm391 = vcmask 128000
      %392 = vst.msk [vmem:[#allocation2 + $0x20] sm:$0x3f] %vm391, 0.0
      %v393 = vld [vmem:[%s380] sm:$0xff]
      %v394 = vld [vmem:[%s380 + $0x8] sm:$0xff]
      %v395 = vld [vmem:[%s380 + $0x10] sm:$0xff]
      %v396 = vld [vmem:[%s380 + $0x18] sm:$0xff]
      %397 = vst.msk [vmem:[#allocation2 + $0x3] sm:$0xff] %vm386, %v393
      %398 = vst.msk [vmem:[#allocation2 + $0xb] sm:$0xff] %vm386, %v394
      %399 = vst.msk [vmem:[#allocation2 + $0x13] sm:$0xff] %vm386, %v395
      %400 = vst.msk [vmem:[#allocation2 + $0x1b] sm:$0xff] %vm386, %v396
      %v401 = vld [vmem:[#allocation2] sm:$0xff]
      %v402 = vld [vmem:[#allocation2 + $0x8] sm:$0xff]
      %v403 = vld [vmem:[#allocation2 + $0x10] sm:$0xff]
      %v404 = vld [vmem:[#allocation2 + $0x18] sm:$0xff]
      %v405 = vld [vmem:[#allocation2 + $0x1] sm:$0xff]
      %v406 = vld [vmem:[#allocation2 + $0x9] sm:$0xff]
      %v407 = vld [vmem:[#allocation2 + $0x11] sm:$0xff]
      %v408 = vld [vmem:[#allocation2 + $0x19] sm:$0xff]
      %v409 = vld [vmem:[#allocation2 + $0x2] sm:$0xff]
      %v410 = vld [vmem:[#allocation2 + $0xa] sm:$0xff]
      %v411 = vld [vmem:[#allocation2 + $0x12] sm:$0xff]
      %v412 = vld [vmem:[#allocation2 + $0x1a] sm:$0xff]
      %v413 = vld [vmem:[#allocation2 + $0x3] sm:$0xff]
      %v414 = vld [vmem:[#allocation2 + $0xb] sm:$0xff]
      %v415 = vld [vmem:[#allocation2 + $0x13] sm:$0xff]
      %v416 = vld [vmem:[#allocation2 + $0x1b] sm:$0xff]
      %v417 = vld [vmem:[#allocation2 + $0x4] sm:$0xff]
      %v418 = vld [vmem:[#allocation2 + $0xc] sm:$0xff]
      %v419 = vld [vmem:[#allocation2 + $0x14] sm:$0xff]
      %v420 = vld [vmem:[#allocation2 + $0x1c] sm:$0xff]
      %v421 = vld [vmem:[#allocation2 + $0x5] sm:$0xff]
      %v422 = vld [vmem:[#allocation2 + $0xd] sm:$0xff]
      %v423 = vld [vmem:[#allocation2 + $0x15] sm:$0xff]
      %v424 = vld [vmem:[#allocation2 + $0x1d] sm:$0xff]
      %v425 = vld [vmem:[#allocation2 + $0x6] sm:$0xff]
      %v426 = vld [vmem:[#allocation2 + $0xe] sm:$0xff]
      %v427 = vld [vmem:[#allocation2 + $0x16] sm:$0xff]
      %v428 = vld [vmem:[#allocation2 + $0x1e] sm:$0xff]
      %433 = vrot.lane.b32.xlu0 %v405, 16
      %v434 = vpop.permute.xlu0 %433
      %435 = vrot.lane.b32.xlu0 %v406, 16
      %v436 = vpop.permute.xlu0 %435
      %437 = vrot.lane.b32.xlu0 %v407, 16
      %v438 = vpop.permute.xlu0 %437
      %439 = vrot.lane.b32.xlu0 %v408, 16
      %v440 = vpop.permute.xlu0 %439
      %449 = vrot.lane.b32.xlu0 %v409, 32
      %v450 = vpop.permute.xlu0 %449
      %451 = vrot.lane.b32.xlu0 %v410, 32
      %v452 = vpop.permute.xlu0 %451
      %453 = vrot.lane.b32.xlu0 %v411, 32
      %v454 = vpop.permute.xlu0 %453
      %455 = vrot.lane.b32.xlu0 %v412, 32
      %v456 = vpop.permute.xlu0 %455
      %465 = vrot.lane.b32.xlu0 %v413, 48
      %v466 = vpop.permute.xlu0 %465
      %467 = vrot.lane.b32.xlu0 %v414, 48
      %v468 = vpop.permute.xlu0 %467
      %469 = vrot.lane.b32.xlu0 %v415, 48
      %v470 = vpop.permute.xlu0 %469
      %471 = vrot.lane.b32.xlu0 %v416, 48
      %v472 = vpop.permute.xlu0 %471
      %481 = vrot.lane.b32.xlu0 %v417, 64
      %v482 = vpop.permute.xlu0 %481
      %483 = vrot.lane.b32.xlu0 %v418, 64
      %v484 = vpop.permute.xlu0 %483
      %485 = vrot.lane.b32.xlu0 %v419, 64
      %v486 = vpop.permute.xlu0 %485
      %487 = vrot.lane.b32.xlu0 %v420, 64
      %v488 = vpop.permute.xlu0 %487
      %497 = vrot.lane.b32.xlu0 %v421, 80
      %v498 = vpop.permute.xlu0 %497
      %499 = vrot.lane.b32.xlu0 %v422, 80
      %v500 = vpop.permute.xlu0 %499
      %501 = vrot.lane.b32.xlu0 %v423, 80
      %v502 = vpop.permute.xlu0 %501
      %503 = vrot.lane.b32.xlu0 %v424, 80
      %v504 = vpop.permute.xlu0 %503
      %513 = vrot.lane.b32.xlu0 %v425, 96
      %v514 = vpop.permute.xlu0 %513
      %515 = vrot.lane.b32.xlu0 %v426, 96
      %v516 = vpop.permute.xlu0 %515
      %517 = vrot.lane.b32.xlu0 %v427, 96
      %v518 = vpop.permute.xlu0 %517
      %519 = vrot.lane.b32.xlu0 %v428, 96
      %v520 = vpop.permute.xlu0 %519
      %v525 = vsel %vm386, %v401, %v434
      %v526 = vsel %vm386, %v402, %v436
      %v527 = vsel %vm386, %v403, %v438
      %v528 = vsel %vm386, %v404, %v440
      %vm529 = vcmask 261120
      %v530 = vsel %vm529, %v525, %v450
      %v531 = vsel %vm529, %v526, %v452
      %v532 = vsel %vm529, %v527, %v454
      %v533 = vsel %vm529, %v528, %v456
      %vm534 = vcmask 392192
      %v535 = vsel %vm534, %v530, %v466
      %v536 = vsel %vm534, %v531, %v468
      %v537 = vsel %vm534, %v532, %v470
      %v538 = vsel %vm534, %v533, %v472
      %vm539 = vcmask 523264
      %v540 = vsel %vm539, %v535, %v482
      %v541 = vsel %vm539, %v536, %v484
      %v542 = vsel %vm539, %v537, %v486
      %v543 = vsel %vm539, %v538, %v488
      %vm544 = vcmask 654336
      %v545 = vsel %vm544, %v540, %v498
      %v546 = vsel %vm544, %v541, %v500
      %v547 = vsel %vm544, %v542, %v502
      %v548 = vsel %vm544, %v543, %v504
      %vm549 = vcmask 785408
      %v550 = vsel %vm549, %v545, %v514
      %v551 = vsel %vm549, %v546, %v516
      %v552 = vsel %vm549, %v547, %v518
      %v553 = vsel %vm549, %v548, %v520
      %v554 = vpack.c.bf16 %v551, %v550
      %v555 = vpack.c.bf16 %v553, %v552
      %v556 = vld [vmem:[%s1] sm:$0xf]
      %v557 = vld [vmem:[%s1 + $0x4] sm:$0xf]
      %v558 = vld [vmem:[%s1 + $0x8] sm:$0xf]
      %v559 = vld [vmem:[%s1 + $0xc] sm:$0xf]
      %v560 = vld [vmem:[%s1 + $0x10] sm:$0xf]
      %v561 = vld [vmem:[%s1 + $0x14] sm:$0xf]
      %v562 = vld [vmem:[%s1 + $0x18] sm:$0xf]
      %v563 = vld [vmem:[%s1 + $0x1c] sm:$0xf]
      %v564 = vld [vmem:[%s1 + $0x20] sm:$0xf]
      %v565 = vld [vmem:[%s1 + $0x24] sm:$0xf]
      %v566 = vld [vmem:[%s1 + $0x28] sm:$0xf]
      %v567 = vld [vmem:[%s1 + $0x2c] sm:$0xf]
      %v568 = vld [vmem:[%s1 + $0x30] sm:$0xf]
      %v569 = vld [vmem:[%s1 + $0x34] sm:$0xf]
      %v570 = vld [vmem:[%s2] sm:$0x1]
      %v572 = vlaneseq
      %v573 = vshrl.u32 %v572, 7
      %v574 = vsub.s32 0, %v573
      %v575 = vrot.slane %v570, %v574
      %v591 = vunpack.c.l.b16 %v556
      %v592 = vunpack.c.l.b16 %v557
      %v593 = vunpack.c.l.b16 %v558
      %v594 = vunpack.c.l.b16 %v559
      %v595 = vunpack.c.l.b16 %v560
      %v596 = vunpack.c.l.b16 %v561
      %v597 = vunpack.c.l.b16 %v562
      %v598 = vunpack.c.l.b16 %v563
      %v599 = vunpack.c.l.b16 %v564
      %v600 = vunpack.c.l.b16 %v565
      %v601 = vunpack.c.l.b16 %v566
      %v602 = vunpack.c.l.b16 %v567
      %v603 = vunpack.c.l.b16 %v568
      %v604 = vunpack.c.l.b16 %v569
      %v605 = vpack.c.b16 %v592, %v591
      %v606 = vpack.c.b16 %v594, %v593
      %v607 = vpack.c.b16 %v596, %v595
      %v608 = vpack.c.b16 %v598, %v597
      %v609 = vpack.c.b16 %v600, %v599
      %v610 = vpack.c.b16 %v602, %v601
      %v611 = vpack.c.b16 %v604, %v603
      %vm619 = vcmask 916480
      %v621 = vsel %vm619, %v554, 0
      %v624 = vsel %vm619, %v555, 0
      %626 = vmatprep.subr.bf16.mxu0 0
      %627 = vmatpush1.bf16.msra.mxu0 %v605
      %628 = vmatprep.subr.bf16.mxu0 0
      %629 = vmatpush1.bf16.msra.mxu0 %v606
      %630 = vmatprep.subr.bf16.mxu0 0
      %631 = vmatpush1.bf16.msra.mxu0 %v607
      %632 = vmatprep.subr.bf16.mxu0 0
      %633 = vmatpush1.bf16.msra.mxu0 %v608
      %634 = vmatprep.subr.bf16.mxu0 0
      %635 = vmatpush1.bf16.msra.mxu0 %v609
      %636 = vmatprep.subr.bf16.mxu0 0
      %637 = vmatpush1.bf16.msra.mxu0 %v610
      %638 = vmatprep.subr.bf16.mxu0 0
      %639 = vmatpush1.bf16.msra.mxu0 %v611
      %640 = vmatprep.subr.bf16.mxu0 0
      %641 = vmatpush1.bf16.msra.mxu0 0
      %642 = vmatprep.subr.bf16.mxu0 0
      %643 = vmatpush1.bf16.msra.mxu0 0
      %644 = vmatprep.subr.bf16.mxu0 0
      %645 = vmatpush1.bf16.msra.mxu0 0
      %646 = vmatprep.subr.bf16.mxu0 0
      %647 = vmatpush1.bf16.msra.mxu0 0
      %648 = vmatprep.subr.bf16.mxu0 0
      %649 = vmatpush1.bf16.msra.mxu0 0
      %650 = vmatprep.subr.bf16.mxu0 0
      %651 = vmatpush1.bf16.msra.mxu0 0
      %652 = vmatprep.subr.bf16.mxu0 0
      %653 = vmatpush1.bf16.msra.mxu0 0
      %654 = vmatprep.subr.bf16.mxu0 0
      %655 = vmatpush1.bf16.msra.mxu0 0
      %656 = vmatprep.subr.bf16.mxu0 0
      %657 = vmatpush1.bf16.msra.mxu0 0
      %658 = vmatprep.mubr.bf16.mxu0 0
      %659 = vmatmul.mubr.bf16.gmra.mrb[0].mxu0 %v621
      %v660 = vpop.f32.mrb[0].mxu0
      %v661 = vadd.f32 %v575, %v660
      %v662 = vpop.f32.mrb[0].mxu0
      %v663 = vpop.f32.mrb[0].mxu0
      %v664 = vadd.f32 %v575, %v663
      %v665 = vpop.f32.mrb[0].mxu0
      %666 = vmatprep.mubr.bf16.mxu0 0
      %667 = vmatmul.mubr.bf16.gmra.mrb[0].mxu0 %v624
      %v668 = vpop.f32.mrb[0].mxu0
      %v669 = vadd.f32 %v575, %v668
      %v670 = vpop.f32.mrb[0].mxu0
      %v671 = vpop.f32.mrb[0].mxu0
      %v672 = vadd.f32 %v575, %v671
      %v673 = vpop.f32.mrb[0].mxu0
      %674 = vdwg.mxu0
      %v675 = vxor.u32 %v661, 2147483648
      %v676 = vxor.u32 %v664, 2147483648
      %v677 = vxor.u32 %v669, 2147483648
      %v678 = vxor.u32 %v672, 2147483648
      %v679 = vmul.f32 %v675, 1.442695
      %v680 = vpow.pop %v679
      %v681 = vmul.f32 %v676, 1.442695
      %v682 = vpow.pop %v681
      %v683 = vmul.f32 %v677, 1.442695
      %v684 = vpow.pop %v683
      %v685 = vmul.f32 %v678, 1.442695
      %v686 = vpow.pop %v685
      %v687 = vadd.f32 %v680, 1.0
      %v688 = vadd.f32 %v682, 1.0
      %v689 = vadd.f32 %v684, 1.0
      %v690 = vadd.f32 %v686, 1.0
      %v691 = vrcp.pop %v687
      %v692 = vmul.f32 1.0, %v691
      %v693 = vrcp.pop %v688
      %v694 = vmul.f32 1.0, %v693
      %v695 = vrcp.pop %v689
      %v696 = vmul.f32 1.0, %v695
      %v697 = vrcp.pop %v690
      %v698 = vmul.f32 1.0, %v697
      %v699 = vmul.f32 %v661, %v692
      %v700 = vmul.f32 %v664, %v694
      %v701 = vmul.f32 %v669, %v696
      %v702 = vmul.f32 %v672, %v698
      %703 = vst.msk [vmem:[#allocation3] sm:$0xff] %vm386, 0.0
      %704 = vst.msk [vmem:[#allocation3 + $0x8] sm:$0xff] %vm386, 0.0
      %705 = vst.msk [vmem:[#allocation3 + $0x10] sm:$0xff] %vm386, 0.0
      %706 = vst.msk [vmem:[#allocation3 + $0x18] sm:$0xff] %vm386, 0.0
      %vm707 = vcmask 123904
      %708 = vst.msk [vmem:[#allocation3 + $0x20] sm:$0x3] %vm707, 0.0
      %709 = vst.msk [vmem:[#allocation3 + $0x1] sm:$0xff] %vm386, %v699
      %710 = vst.msk [vmem:[#allocation3 + $0x9] sm:$0xff] %vm386, %v700
      %711 = vst.msk [vmem:[#allocation3 + $0x11] sm:$0xff] %vm386, %v701
      %712 = vst.msk [vmem:[#allocation3 + $0x19] sm:$0xff] %vm386, %v702
      %v713 = vld [vmem:[#allocation3] ss:$2 sm:$0xff]
      %s714 = scalar_lea.vmem [#allocation3], 16
      %v715 = vld [vmem:[%s714] ss:$2 sm:$0xff]
      %s716 = scalar_lea.vmem [#allocation3], 1
      %v717 = vld [vmem:[%s716] ss:$2 sm:$0xff]
      %s718 = scalar_lea.vmem [#allocation3], 17
      %v719 = vld [vmem:[%s718] ss:$2 sm:$0xff]
      %s720 = scalar_lea.vmem [#allocation3], 2
      %v721 = vld [vmem:[%s720] ss:$2 sm:$0xff]
      %s722 = scalar_lea.vmem [#allocation3], 18
      %v723 = vld [vmem:[%s722] ss:$2 sm:$0xff]
      %s724 = scalar_lea.vmem [#allocation3], 3
      %v725 = vld [vmem:[%s724] ss:$2 sm:$0xff]
      %s726 = scalar_lea.vmem [#allocation3], 19
      %v727 = vld [vmem:[%s726] ss:$2 sm:$0xff]
      %730 = vrot.lane.b32.xlu0 %v717, 16
      %v731 = vpop.permute.xlu0 %730
      %732 = vrot.lane.b32.xlu0 %v719, 16
      %v733 = vpop.permute.xlu0 %732
      %738 = vrot.lane.b32.xlu0 %v721, 32
      %v739 = vpop.permute.xlu0 %738
      %740 = vrot.lane.b32.xlu0 %v723, 32
      %v741 = vpop.permute.xlu0 %740
      %746 = vrot.lane.b32.xlu0 %v725, 48
      %v747 = vpop.permute.xlu0 %746
      %748 = vrot.lane.b32.xlu0 %v727, 48
      %v749 = vpop.permute.xlu0 %748
      %v752 = vsel %vm386, %v713, %v731
      %v753 = vsel %vm386, %v715, %v733
      %v754 = vsel %vm529, %v752, %v739
      %v755 = vsel %vm529, %v753, %v741
      %v756 = vsel %vm534, %v754, %v747
      %v757 = vsel %vm534, %v755, %v749
      %v758 = vpack.c.bf16 %v757, %v756
      %v759 = vld [vmem:[%s3] sm:$0xf]
      %v760 = vld [vmem:[%s3 + $0x4] sm:$0xf]
      %v761 = vld [vmem:[%s3 + $0x8] sm:$0xf]
      %v762 = vld [vmem:[%s3 + $0xc] sm:$0xf]
      %v763 = vld [vmem:[%s3 + $0x10] sm:$0xf]
      %v764 = vld [vmem:[%s3 + $0x14] sm:$0xf]
      %v765 = vld [vmem:[%s3 + $0x18] sm:$0xf]
      %v766 = vld [vmem:[%s3 + $0x1c] sm:$0xf]
      %v767 = vld [vmem:[%s4] sm:$0x1]
      %v769 = vlaneseq
      %v770 = vshrl.u32 %v769, 7
      %v771 = vsub.s32 0, %v770
      %v772 = vrot.slane %v767, %v771
      %v782 = vunpack.c.l.b16 %v759
      %v783 = vunpack.c.l.b16 %v760
      %v784 = vunpack.c.l.b16 %v761
      %v785 = vunpack.c.l.b16 %v762
      %v786 = vunpack.c.l.b16 %v763
      %v787 = vunpack.c.l.b16 %v764
      %v788 = vunpack.c.l.b16 %v765
      %v789 = vunpack.c.l.b16 %v766
      %v790 = vpack.c.b16 %v783, %v782
      %v791 = vpack.c.b16 %v785, %v784
      %v792 = vpack.c.b16 %v787, %v786
      %v793 = vpack.c.b16 %v789, %v788
      %v799 = vsel %vm539, %v758, 0
      %801 = vmatprep.subr.bf16.mxu0 0
      %802 = vmatpush1.bf16.msra.mxu0 %v790
      %803 = vmatprep.subr.bf16.mxu0 0
      %804 = vmatpush1.bf16.msra.mxu0 %v791
      %805 = vmatprep.subr.bf16.mxu0 0
      %806 = vmatpush1.bf16.msra.mxu0 %v792
      %807 = vmatprep.subr.bf16.mxu0 0
      %808 = vmatpush1.bf16.msra.mxu0 %v793
      %809 = vmatprep.subr.bf16.mxu0 0
      %810 = vmatpush1.bf16.msra.mxu0 0
      %811 = vmatprep.subr.bf16.mxu0 0
      %812 = vmatpush1.bf16.msra.mxu0 0
      %813 = vmatprep.subr.bf16.mxu0 0
      %814 = vmatpush1.bf16.msra.mxu0 0
      %815 = vmatprep.subr.bf16.mxu0 0
      %816 = vmatpush1.bf16.msra.mxu0 0
      %817 = vmatprep.subr.bf16.mxu0 0
      %818 = vmatpush1.bf16.msra.mxu0 0
      %819 = vmatprep.subr.bf16.mxu0 0
      %820 = vmatpush1.bf16.msra.mxu0 0
      %821 = vmatprep.subr.bf16.mxu0 0
      %822 = vmatpush1.bf16.msra.mxu0 0
      %823 = vmatprep.subr.bf16.mxu0 0
      %824 = vmatpush1.bf16.msra.mxu0 0
      %825 = vmatprep.subr.bf16.mxu0 0
      %826 = vmatpush1.bf16.msra.mxu0 0
      %827 = vmatprep.subr.bf16.mxu0 0
      %828 = vmatpush1.bf16.msra.mxu0 0
      %829 = vmatprep.subr.bf16.mxu0 0
      %830 = vmatpush1.bf16.msra.mxu0 0
      %831 = vmatprep.subr.bf16.mxu0 0
      %832 = vmatpush1.bf16.msra.mxu0 0
      %833 = vmatprep.mubr.bf16.mxu0 0
      %834 = vmatmul.mubr.bf16.gmra.mrb[0].mxu0 %v799
      %v835 = vpop.f32.mrb[0].mxu0
      %v836 = vadd.f32 %v772, %v835
      %v837 = vpop.f32.mrb[0].mxu0
      %v838 = vpop.f32.mrb[0].mxu0
      %v839 = vadd.f32 %v772, %v838
      %v840 = vpop.f32.mrb[0].mxu0
      %841 = vdwg.mxu0
      %v842 = vxor.u32 %v836, 2147483648
      %v843 = vxor.u32 %v839, 2147483648
      %v844 = vmul.f32 %v842, 1.442695
      %v845 = vpow.pop %v844
      %v846 = vmul.f32 %v843, 1.442695
      %v847 = vpow.pop %v846
      %v848 = vadd.f32 %v845, 1.0
      %v849 = vadd.f32 %v847, 1.0
      %v850 = vrcp.pop %v848
      %v851 = vmul.f32 1.0, %v850
      %v852 = vrcp.pop %v849
      %v853 = vmul.f32 1.0, %v852
      %v854 = vmul.f32 %v836, %v851
      %v855 = vmul.f32 %v839, %v853
      %856 = vst.msk [vmem:[#allocation4] sm:$0xff] %vm386, 0.0
      %857 = vst.msk [vmem:[#allocation4 + $0x8] sm:$0xff] %vm386, 0.0
      %858 = vst.msk [vmem:[#allocation4 + $0x10] sm:$0x3] %vm707, 0.0
      %859 = vst.msk [vmem:[#allocation4 + $0x1] sm:$0xff] %vm386, %v854
      %860 = vst.msk [vmem:[#allocation4 + $0x9] sm:$0xff] %vm386, %v855
      %v861 = vld [vmem:[#allocation4] ss:$2 sm:$0xff]
      %s862 = scalar_lea.vmem [#allocation4], 1
      %v863 = vld [vmem:[%s862] ss:$2 sm:$0xff]
      %s864 = scalar_lea.vmem [#allocation4], 2
      %v865 = vld [vmem:[%s864] ss:$2 sm:$0xff]
      %s866 = scalar_lea.vmem [#allocation4], 3
      %v867 = vld [vmem:[%s866] ss:$2 sm:$0xff]
      %869 = vrot.lane.b32.xlu0 %v863, 16
      %v870 = vpop.permute.xlu0 %869
      %873 = vrot.lane.b32.xlu0 %v865, 32
      %v874 = vpop.permute.xlu0 %873
      %877 = vrot.lane.b32.xlu0 %v867, 48
      %v878 = vpop.permute.xlu0 %877
      %v880 = vsel %vm386, %v861, %v870
      %v881 = vsel %vm529, %v880, %v874
      %v882 = vsel %vm534, %v881, %v878
      %v883 = vpack.c.bf16 %v882, %v882
      %v884 = vld [vmem:[%s5] sm:$0xf]
      %v885 = vld [vmem:[%s5 + $0x4] sm:$0xf]
      %v886 = vld [vmem:[%s5 + $0x8] sm:$0xf]
      %v887 = vld [vmem:[%s5 + $0xc] sm:$0xf]
      %v888 = vld [vmem:[%s5 + $0x10] sm:$0xf]
      %v889 = vld [vmem:[%s5 + $0x14] sm:$0xf]
      %v890 = vld [vmem:[%s5 + $0x18] sm:$0xf]
      %v891 = vld [vmem:[%s5 + $0x1c] sm:$0xf]
      %v892 = vld [vmem:[%s6] sm:$0x1]
      %v894 = vlaneseq
      %v895 = vshrl.u32 %v894, 7
      %v896 = vsub.s32 0, %v895
      %v897 = vrot.slane %v892, %v896
      %v907 = vunpack.c.l.b16 %v884
      %v908 = vunpack.c.l.b16 %v885
      %v909 = vunpack.c.l.b16 %v886
      %v910 = vunpack.c.l.b16 %v887
      %v911 = vunpack.c.l.b16 %v888
      %v912 = vunpack.c.l.b16 %v889
      %v913 = vunpack.c.l.b16 %v890
      %v914 = vunpack.c.l.b16 %v891
      %v915 = vpack.c.b16 %v908, %v907
      %v916 = vpack.c.b16 %v910, %v909
      %v917 = vpack.c.b16 %v912, %v911
      %v918 = vpack.c.b16 %v914, %v913
      %v924 = vsel %vm539, %v883, 0
      %926 = vmatprep.subr.bf16.mxu0 0
      %927 = vmatpush1.bf16.msra.mxu0 %v915
      %928 = vmatprep.subr.bf16.mxu0 0
      %929 = vmatpush1.bf16.msra.mxu0 %v916
      %930 = vmatprep.subr.bf16.mxu0 0
      %931 = vmatpush1.bf16.msra.mxu0 %v917
      %932 = vmatprep.subr.bf16.mxu0 0
      %933 = vmatpush1.bf16.msra.mxu0 %v918
      %934 = vmatprep.subr.bf16.mxu0 0
      %935 = vmatpush1.bf16.msra.mxu0 0
      %936 = vmatprep.subr.bf16.mxu0 0
      %937 = vmatpush1.bf16.msra.mxu0 0
      %938 = vmatprep.subr.bf16.mxu0 0
      %939 = vmatpush1.bf16.msra.mxu0 0
      %940 = vmatprep.subr.bf16.mxu0 0
      %941 = vmatpush1.bf16.msra.mxu0 0
      %942 = vmatprep.subr.bf16.mxu0 0
      %943 = vmatpush1.bf16.msra.mxu0 0
      %944 = vmatprep.subr.bf16.mxu0 0
      %945 = vmatpush1.bf16.msra.mxu0 0
      %946 = vmatprep.subr.bf16.mxu0 0
      %947 = vmatpush1.bf16.msra.mxu0 0
      %948 = vmatprep.subr.bf16.mxu0 0
      %949 = vmatpush1.bf16.msra.mxu0 0
      %950 = vmatprep.subr.bf16.mxu0 0
      %951 = vmatpush1.bf16.msra.mxu0 0
      %952 = vmatprep.subr.bf16.mxu0 0
      %953 = vmatpush1.bf16.msra.mxu0 0
      %954 = vmatprep.subr.bf16.mxu0 0
      %955 = vmatpush1.bf16.msra.mxu0 0
      %956 = vmatprep.subr.bf16.mxu0 0
      %957 = vmatpush1.bf16.msra.mxu0 0
      %958 = vmatprep.mubr.bf16.mxu0 0
      %959 = vmatmul.mubr.bf16.gmra.mrb[0].mxu0 %v924
      %v960 = vpop.f32.mrb[0].mxu0
      %v961 = vadd.f32 %v897, %v960
      %v962 = vpop.f32.mrb[0].mxu0
      %v963 = vpop.f32.mrb[0].mxu0
      %v964 = vpop.f32.mrb[0].mxu0
      %965 = vdwg.mxu0
      %v966 = vxor.u32 %v961, 2147483648
      %v967 = vmul.f32 %v966, 1.442695
      %v968 = vpow.pop %v967
      %v969 = vadd.f32 %v968, 1.0
      %v970 = vrcp.pop %v969
      %v971 = vmul.f32 1.0, %v970
      %v972 = vmul.f32 %v961, %v971
      %973 = vst.msk [vmem:[#allocation5] sm:$0xff] %vm529, %v972
      %v974 = vld [vmem:[#allocation5] sm:$0xff]
      %v975 = vpack.c.bf16 %v974, %v974
      %v976 = vld [vmem:[%s7] sm:$0xf]
      %v977 = vld [vmem:[%s7 + $0x4] sm:$0xf]
      %v978 = vld [vmem:[%s7 + $0x8] sm:$0xf]
      %v979 = vld [vmem:[%s7 + $0xc] sm:$0xf]
      %v980 = vld [vmem:[%s8] sm:$0x1]
      %v982 = vlaneseq
      %v983 = vshrl.u32 %v982, 7
      %v984 = vsub.s32 0, %v983
      %v985 = vrot.slane %v980, %v984
      %v991 = vunpack.c.l.b16 %v976
      %v992 = vunpack.c.l.b16 %v977
      %v993 = vunpack.c.l.b16 %v978
      %v994 = vunpack.c.l.b16 %v979
      %v995 = vpack.c.b16 %v992, %v991
      %v996 = vpack.c.b16 %v994, %v993
      %v1000 = vsel %vm529, %v975, 0
      %1002 = vmatprep.subr.bf16.mxu0 0
      %1003 = vmatpush1.bf16.msra.mxu0 %v995
      %1004 = vmatprep.subr.bf16.mxu0 0
      %1005 = vmatpush1.bf16.msra.mxu0 %v996
      %1006 = vmatprep.subr.bf16.mxu0 0
      %1007 = vmatpush1.bf16.msra.mxu0 0
      %1008 = vmatprep.subr.bf16.mxu0 0
      %1009 = vmatpush1.bf16.msra.mxu0 0
      %1010 = vmatprep.subr.bf16.mxu0 0
      %1011 = vmatpush1.bf16.msra.mxu0 0
      %1012 = vmatprep.subr.bf16.mxu0 0
      %1013 = vmatpush1.bf16.msra.mxu0 0
      %1014 = vmatprep.subr.bf16.mxu0 0
      %1015 = vmatpush1.bf16.msra.mxu0 0
      %1016 = vmatprep.subr.bf16.mxu0 0
      %1017 = vmatpush1.bf16.msra.mxu0 0
      %1018 = vmatprep.subr.bf16.mxu0 0
      %1019 = vmatpush1.bf16.msra.mxu0 0
      %1020 = vmatprep.subr.bf16.mxu0 0
      %1021 = vmatpush1.bf16.msra.mxu0 0
      %1022 = vmatprep.subr.bf16.mxu0 0
      %1023 = vmatpush1.bf16.msra.mxu0 0
      %1024 = vmatprep.subr.bf16.mxu0 0
      %1025 = vmatpush1.bf16.msra.mxu0 0
      %1026 = vmatprep.subr.bf16.mxu0 0
      %1027 = vmatpush1.bf16.msra.mxu0 0
      %1028 = vmatprep.subr.bf16.mxu0 0
      %1029 = vmatpush1.bf16.msra.mxu0 0
      %1030 = vmatprep.subr.bf16.mxu0 0
      %1031 = vmatpush1.bf16.msra.mxu0 0
      %1032 = vmatprep.subr.bf16.mxu0 0
      %1033 = vmatpush1.bf16.msra.mxu0 0
      %1034 = vmatprep.mubr.bf16.mxu0 0
      %1035 = vmatmul.mubr.bf16.gmra.mrb[0].mxu0 %v1000
      %v1036 = vpop.f32.mrb[0].mxu0
      %v1037 = vadd.f32 %v985, %v1036
      %v1038 = vpop.f32.mrb[0].mxu0
      %v1039 = vpop.f32.mrb[0].mxu0
      %v1040 = vpop.f32.mrb[0].mxu0
      %1041 = vdwg.mxu0
      %v1042 = vxor.u32 %v1037, 2147483648
      %v1043 = vmul.f32 %v1042, 1.442695
      %v1044 = vpow.pop %v1043
      %v1045 = vadd.f32 %v1044, 1.0
      %v1046 = vrcp.pop %v1045
      %v1047 = vmul.f32 1.0, %v1046
      %v1048 = vmul.f32 %v1037, %v1047
      %1049 = vst.msk [vmem:[#allocation6] sm:$0xff] %vm529, %v1048
      %v1050 = vld [vmem:[#allocation6] sm:$0x1f]
      %v1051 = vld [vmem:[#allocation6 + $0x1] sm:$0x1f]
      %v1052 = vld [vmem:[#allocation6 + $0x2] sm:$0x1f]
      %v1053 = vld [vmem:[#allocation6 + $0x3] sm:$0x1f]
      %1055 = vrot.lane.b32.xlu0 %v1051, 32
      %v1056 = vpop.permute.xlu0 %1055
      %1059 = vrot.lane.b32.xlu0 %v1052, 64
      %v1060 = vpop.permute.xlu0 %1059
      %1063 = vrot.lane.b32.xlu0 %v1053, 96
      %v1064 = vpop.permute.xlu0 %1063
      %v1066 = vsel %vm529, %v1050, %v1056
      %v1067 = vsel %vm539, %v1066, %v1060
      %v1068 = vsel %vm549, %v1067, %v1064
      %v1069 = vpack.c.bf16 %v1068, %v1068
      %v1070 = vld [vmem:[%s9] sm:$0xf]
      %v1071 = vld [vmem:[%s9 + $0x4] sm:$0xf]
      %v1072 = vld [vmem:[%s9 + $0x8] sm:$0xf]
      %v1073 = vld [vmem:[%s9 + $0xc] sm:$0xf]
      %v1074 = vld [vmem:[%s9 + $0x10] sm:$0xf]
      %v1075 = vld [vmem:[%s9 + $0x14] sm:$0xf]
      %v1076 = vld [vmem:[%s9 + $0x18] sm:$0xf]
      %v1077 = vld [vmem:[%s9 + $0x1c] sm:$0xf]
      %v1078 = vld [vmem:[%s9 + $0x20] sm:$0xf]
      %v1079 = vld [vmem:[%s9 + $0x24] sm:$0xf]
      %v1080 = vld [vmem:[%s9 + $0x28] sm:$0xf]
      %v1081 = vld [vmem:[%s9 + $0x2c] sm:$0xf]
      %v1082 = vld [vmem:[%s9 + $0x30] sm:$0xf]
      %v1083 = vld [vmem:[%s9 + $0x34] sm:$0xf]
      %v1084 = vld [vmem:[%s9 + $0x38] sm:$0xf]
      %v1085 = vld [vmem:[%s9 + $0x3c] sm:$0xf]
      %v1086 = vld [vmem:[%s10] sm:$0x1]
      %v1088 = vlaneseq
      %v1089 = vshrl.u32 %v1088, 7
      %v1090 = vsub.s32 0, %v1089
      %v1091 = vrot.slane %v1086, %v1090
      %v1109 = vunpack.c.l.b16 %v1070
      %v1110 = vunpack.c.l.b16 %v1071
      %v1111 = vunpack.c.l.b16 %v1072
      %v1112 = vunpack.c.l.b16 %v1073
      %v1113 = vunpack.c.l.b16 %v1074
      %v1114 = vunpack.c.l.b16 %v1075
      %v1115 = vunpack.c.l.b16 %v1076
      %v1116 = vunpack.c.l.b16 %v1077
      %v1117 = vunpack.c.l.b16 %v1078
      %v1118 = vunpack.c.l.b16 %v1079
      %v1119 = vunpack.c.l.b16 %v1080
      %v1120 = vunpack.c.l.b16 %v1081
      %v1121 = vunpack.c.l.b16 %v1082
      %v1122 = vunpack.c.l.b16 %v1083
      %v1123 = vunpack.c.l.b16 %v1084
      %v1124 = vunpack.c.l.b16 %v1085
      %v1125 = vpack.c.b16 %v1110, %v1109
      %v1126 = vpack.c.b16 %v1112, %v1111
      %v1127 = vpack.c.b16 %v1114, %v1113
      %v1128 = vpack.c.b16 %v1116, %v1115
      %v1129 = vpack.c.b16 %v1118, %v1117
      %v1130 = vpack.c.b16 %v1120, %v1119
      %v1131 = vpack.c.b16 %v1122, %v1121
      %v1132 = vpack.c.b16 %v1124, %v1123
      %1141 = vmatprep.subr.bf16.mxu0 0
      %1142 = vmatpush1.bf16.msra.mxu0 %v1125
      %1143 = vmatprep.subr.bf16.mxu0 0
      %1144 = vmatpush1.bf16.msra.mxu0 %v1126
      %1145 = vmatprep.subr.bf16.mxu0 0
      %1146 = vmatpush1.bf16.msra.mxu0 %v1127
      %1147 = vmatprep.subr.bf16.mxu0 0
      %1148 = vmatpush1.bf16.msra.mxu0 %v1128
      %1149 = vmatprep.subr.bf16.mxu0 0
      %1150 = vmatpush1.bf16.msra.mxu0 %v1129
      %1151 = vmatprep.subr.bf16.mxu0 0
      %1152 = vmatpush1.bf16.msra.mxu0 %v1130
      %1153 = vmatprep.subr.bf16.mxu0 0
      %1154 = vmatpush1.bf16.msra.mxu0 %v1131
      %1155 = vmatprep.subr.bf16.mxu0 0
      %1156 = vmatpush1.bf16.msra.mxu0 %v1132
      %1157 = vmatprep.subr.bf16.mxu0 0
      %1158 = vmatpush1.bf16.msra.mxu0 0
      %1159 = vmatprep.subr.bf16.mxu0 0
      %1160 = vmatpush1.bf16.msra.mxu0 0
      %1161 = vmatprep.subr.bf16.mxu0 0
      %1162 = vmatpush1.bf16.msra.mxu0 0
      %1163 = vmatprep.subr.bf16.mxu0 0
      %1164 = vmatpush1.bf16.msra.mxu0 0
      %1165 = vmatprep.subr.bf16.mxu0 0
      %1166 = vmatpush1.bf16.msra.mxu0 0
      %1167 = vmatprep.subr.bf16.mxu0 0
      %1168 = vmatpush1.bf16.msra.mxu0 0
      %1169 = vmatprep.subr.bf16.mxu0 0
      %1170 = vmatpush1.bf16.msra.mxu0 0
      %1171 = vmatprep.subr.bf16.mxu0 0
      %1172 = vmatpush1.bf16.msra.mxu0 0
      %1173 = vmatprep.mubr.bf16.mxu0 0
      %1174 = vmatmul.mubr.bf16.gmra.mrb[0].mxu0 %v1069
      %v1175 = vpop.f32.mrb[0].mxu0
      %v1176 = vadd.f32 %v1091, %v1175
      %v1177 = vpop.f32.mrb[0].mxu0
      %v1178 = vpop.f32.mrb[0].mxu0
      %v1179 = vpop.f32.mrb[0].mxu0
      %1180 = vdwg.mxu0
      %vm1181 = vcmask 126976
      %1182 = vst.msk [vmem:[%s384] sm:$0x1f] %vm1181, %v1176
      %p1183 = scmp.lt.s32.totalorder %s22, 1
      %s1184 = scalar_select %p1183, %s22, 1
      %s1185 = smul.addr %s1184, 8
      %s1186 = scalar_lea.vmem %s11, %s1185
      // Predicated region
      $region65: #{tpu_custom_call.1} parent=63 // pred_check
        %p1187 = pneg %p276
      $region66: #{tpu_custom_call.1} parent=63 // pred_check_branch
        %1189 = sbr.rel (%p1187) target = $region68
      $region67: #{tpu_custom_call.1} parent=63 // pred_region
        _
      $region68: #{tpu_custom_call.1} parent=63 // pred_fallthru
        _
    $region64: #{tpu_custom_call.1} parent=5 // pred_fallthru
      _
    %p1190 = scmp.le.s32.totalorder 2, %s17
    // Predicated region
    $region69: #{tpu_custom_call.1} parent=5 // pred_check
      %p1191 = pneg %p1190
    $region70: #{tpu_custom_call.1} parent=5 // pred_check_branch
      %1193 = sbr.rel (%p1191) target = $region72
    $region71: #{tpu_custom_call.1} parent=5 // pred_region
      %s1194 = ssub.s32 %s17, 2
      // Predicated region
      $region73: #{tpu_custom_call.1} parent=71 // pred_check
        %p1195 = pneg %p282
      $region74: #{tpu_custom_call.1} parent=71 // pred_check_branch
        %1197 = sbr.rel (%p1195) target = $region76
      $region75: #{tpu_custom_call.1} parent=71 // pred_region
        %p1198 = scmp.lt.s32.totalorder %s23, 1
        %s1199 = scalar_select %p1198, %s23, 1
        %s1200 = smul.addr %s1199, 8
        %s1201 = scalar_lea.vmem %s11, %s1200
      $region76: #{tpu_custom_call.1} parent=71 // pred_fallthru
        _
    $region72: #{tpu_custom_call.1} parent=5 // pred_fallthru
      _
  $region6: #{tpu_custom_call.1} parent=0 // loop_footer
    %s21 = sadd.s32 1, %s17
  $region7: #{tpu_custom_call.1} parent=0 // loop_footer_branch
    %16 = sbr.rel target = $region3
  $region8: #{tpu_custom_call.1} parent=0 // loop_exit
    _

</llo_original>
